<compile_context>
chip_gen: v7x
topology: tpu7x:2x2x1
jax: 0.10.0
libtpu: 0.0.40
codegen_flags: <defaults>
</compile_context>

<pallas_src>
import math
import functools

import jax
import jax.numpy as jnp
from jax.experimental import pallas as pl
from jax.experimental.pallas import tpu as pltpu

# ----- small synthetic DPR/BERT config -----
VOCAB = 100
TYPE_VOCAB = 2
MAX_POS = 16
HIDDEN = 128
N_HEADS = 4
HEAD_DIM = HIDDEN // N_HEADS
N_LAYERS = 2
INTERMEDIATE = 256
LN_EPS = 1e-12          # BERT / DPR LayerNorm eps


# ---------------- in-kernel helpers (f32 math: v5e-friendly) ----------------
def _layer_norm(x, g, b):
    mu = jnp.mean(x, axis=-1, keepdims=True)
    var = jnp.mean(jnp.square(x - mu), axis=-1, keepdims=True)
    return (x - mu) * jax.lax.rsqrt(var + LN_EPS) * g + b


def _gelu(x):
    # TODO(synk): BERT/DPR use exact erf-GELU; tanh approximation used here
    # (erf lowering on Mosaic is not guaranteed) -> ~1e-3-level deviation.
    c = math.sqrt(2.0 / math.pi)
    return 0.5 * x * (1.0 + jnp.tanh(c * (x + 0.044715 * x * x * x)))


def _softmax_last(x):
    m = jnp.max(x, axis=-1, keepdims=True)
    e = jnp.exp(x - m)
    return e * pl.reciprocal(jnp.sum(e, axis=-1, keepdims=True), approx=True)


# ---------------- fused encoder kernel ----------------
def _dpr_encoder_kernel(emb_ref, bias_ref, eg_ref, eb_ref,
                        wqkv_ref, bqkv_ref, wo_ref, bo_ref,
                        ln1g_ref, ln1b_ref, wi_ref, bi_ref,
                        wd_ref, bd_ref, ln2g_ref, ln2b_ref,
                        o_ref, h_ref):
    """grid = (layer,): one program = the whole batch through one encoder
    layer.  Hidden state lives in the VMEM scratch `h_ref` across layers.
    Attention over the flattened (B*S) axis is restricted to within-batch
    keys by the precomputed additive bias `bias_ref`."""
    l = pl.program_id(0)
    H, NH, HD = HIDDEN, N_HEADS, HEAD_DIM

    # ---- layer 0: embedding LayerNorm fused into the same kernel ----
    @pl.when(l == 0)
    def _():
        h_ref[...] = _layer_norm(emb_ref[...], eg_ref[...], eb_ref[...])

    x = h_ref[...]                                     # (B*S, H) f32
    xb = x.astype(jnp.bfloat16)

    # ---- fused QKV projection: one (B*S,128)@(128,384) bf16 MXU pass ----
    qkv = jnp.dot(xb, wqkv_ref[...],
                  preferred_element_type=jnp.float32) + bqkv_ref[...]
    q = qkv[:, :H]
    k = qkv[:, H:2 * H]
    v = qkv[:, 2 * H:]

    bias = bias_ref[...]                               # (B*S, B*S) additive
    scale = 1.0 / math.sqrt(HD)

    # ---- multi-head attention ----
    # TODO(synk): heads are a small static loop of 2-D matmuls (a fully
    # batched (NH,B*S,HD) einsum would need an in-kernel sublane/lane
    # relayout).  Per-head contexts are lane-concatenated and projected with
    # a single (B*S,H)@(H,H) matmul.
    ctx_heads = []
    for hh in range(NH):
        sl = slice(hh * HD, (hh + 1) * HD)
        qh = q[:, sl].astype(jnp.bfloat16)             # (B*S, HD)
        kh = k[:, sl].astype(jnp.bfloat16)
        vh = v[:, sl].astype(jnp.bfloat16)
        sc = jnp.einsum('qd,kd->qk', qh, kh,
                        preferred_element_type=jnp.float32) * scale + bias
        p = _softmax_last(sc)                          # (B*S, B*S) f32
        ctx_heads.append(jnp.dot(p.astype(jnp.bfloat16), vh,
                                 preferred_element_type=jnp.float32))
    ctx = jnp.concatenate(ctx_heads, axis=-1)          # (B*S, H)
    attn = jnp.dot(ctx.astype(jnp.bfloat16), wo_ref[...],
                   preferred_element_type=jnp.float32) + bo_ref[...]

    # attention output: add & LayerNorm (dropout is identity in eval mode)
    h1 = _layer_norm(attn + x, ln1g_ref[...], ln1b_ref[...])

    # feed-forward: GELU(h1 Wi + bi) Wd + bd, then add & LayerNorm
    inter = _gelu(jnp.dot(h1.astype(jnp.bfloat16), wi_ref[...],
                          preferred_element_type=jnp.float32) + bi_ref[...])
    ffn = jnp.dot(inter.astype(jnp.bfloat16), wd_ref[...],
                  preferred_element_type=jnp.float32) + bd_ref[...]
    h2 = _layer_norm(ffn + h1, ln2g_ref[...], ln2b_ref[...])

    h_ref[...] = h2                                    # carry to next layer

    @pl.when(l == pl.num_programs(0) - 1)
    def _():
        o_ref[...] = h2


# ---------------- parameter init (synthetic, deterministic) ----------------
def init_params(key):
    keys = iter(jax.random.split(key, 11))

    def nrm(shape):
        return jax.random.normal(next(keys), shape, jnp.float32) * 0.02

    # Per-layer weights stacked on a leading N_LAYERS axis so a single
    # pallas_call can index them via the grid.  Matmul weights (MXU operands)
    # are stored in bf16; biases / LayerNorm params stay f32.
    params = {
        'word_emb': nrm((VOCAB, HIDDEN)),
        'pos_emb': nrm((MAX_POS, HIDDEN)),
        'type_emb': nrm((TYPE_VOCAB, HIDDEN)),
        'emb_ln_g': jnp.ones((1, HIDDEN), jnp.float32),
        'emb_ln_b': jnp.zeros((1, HIDDEN), jnp.float32),
        'wqkv': nrm((N_LAYERS, HIDDEN, 3 * HIDDEN)).astype(jnp.bfloat16),
        'bqkv': nrm((N_LAYERS, 1, 3 * HIDDEN)),
        'wo':   nrm((N_LAYERS, HIDDEN, HIDDEN)).astype(jnp.bfloat16),
        'bo':   nrm((N_LAYERS, 1, HIDDEN)),
        'ln1_g': jnp.ones((N_LAYERS, 1, HIDDEN), jnp.float32),
        'ln1_b': jnp.zeros((N_LAYERS, 1, HIDDEN), jnp.float32),
        'wi':   nrm((N_LAYERS, HIDDEN, INTERMEDIATE)).astype(jnp.bfloat16),
        'bi':   nrm((N_LAYERS, 1, INTERMEDIATE)),
        'wd':   nrm((N_LAYERS, INTERMEDIATE, HIDDEN)).astype(jnp.bfloat16),
        'bd':   nrm((N_LAYERS, 1, HIDDEN)),
        'ln2_g': jnp.ones((N_LAYERS, 1, HIDDEN), jnp.float32),
        'ln2_b': jnp.zeros((N_LAYERS, 1, HIDDEN), jnp.float32),
    }
    return params


# ---------------- forward (== CustomDPRContextEncoder.forward) ----------------
def dpr_context_encoder_forward(params, input_ids, attention_mask):
    B, S = input_ids.shape
    H = HIDDEN
    BS = B * S

    # embeddings (gather + adds are plain-JAX glue; everything downstream runs
    # in ONE fused Pallas kernel over the layer axis).
    # TODO(synk): token_type_ids defaults to all-zeros, matching the PyTorch
    # forward which never passes token_type_ids.
    emb = (params['word_emb'][input_ids]
           + params['pos_emb'][jnp.arange(S)][None, :, :]
           + params['type_emb'][0][None, None, :])               # (B, S, H)
    emb2 = emb.reshape(BS, H).astype(jnp.float32)

    # combined additive attention bias over the flattened (B*S) token axis:
    #   0       if key is in the same batch element AND attention_mask == 1
    #  -1e9     otherwise (blocks cross-batch attention and padded keys)
    batch_ids = jnp.repeat(jnp.arange(B), S)                     # (B*S,)
    same_batch = batch_ids[:, None] == batch_ids[None, :]
    key_ok = (attention_mask.reshape(-1) > 0)[None, :]
    mask_bias = jnp.where(same_batch & key_ok, 0.0, -1e9).astype(jnp.float32)

    layer_w = lambda l: (l, 0, 0)             # stacked per-layer weights
    const2 = lambda l: (0, 0)                 # layer-invariant blocks (1 DMA)
    in_specs = [
        pl.BlockSpec((BS, H), const2),                            # embeddings
        pl.BlockSpec((BS, BS), const2),                           # attn bias
        pl.BlockSpec((1, H), const2),                             # emb LN gamma
        pl.BlockSpec((1, H), const2),                             # emb LN beta
        pl.BlockSpec((None, H, 3 * H), layer_w),                  # Wqkv
        pl.BlockSpec((None, 1, 3 * H), layer_w),                  # bqkv
        pl.BlockSpec((None, H, H), layer_w),                      # Wo
        pl.BlockSpec((None, 1, H), layer_w),                      # bo
        pl.BlockSpec((None, 1, H), layer_w),                      # ln1 gamma
        pl.BlockSpec((None, 1, H), layer_w),                      # ln1 beta
        pl.BlockSpec((None, H, INTERMEDIATE), layer_w),           # Wi
        pl.BlockSpec((None, 1, INTERMEDIATE), layer_w),           # bi
        pl.BlockSpec((None, INTERMEDIATE, H), layer_w),           # Wd
        pl.BlockSpec((None, 1, H), layer_w),                      # bd
        pl.BlockSpec((None, 1, H), layer_w),                      # ln2 gamma
        pl.BlockSpec((None, 1, H), layer_w),                      # ln2 beta
    ]

    out = pl.pallas_call(
        _dpr_encoder_kernel,
        out_shape=jax.ShapeDtypeStruct((BS, H), jnp.float32),
        grid_spec=pltpu.PrefetchScalarGridSpec(
            num_scalar_prefetch=0,
            grid=(N_LAYERS,),
            in_specs=in_specs,
            out_specs=pl.BlockSpec((BS, H), const2),
            scratch_shapes=[pltpu.VMEM((BS, H), jnp.float32)],    # resident h
        ),
        compiler_params=pltpu.CompilerParams(
            dimension_semantics=("arbitrary",)),                  # layer carry
    )(emb2, mask_bias, params['emb_ln_g'], params['emb_ln_b'],
      params['wqkv'], params['bqkv'], params['wo'], params['bo'],
      params['ln1_g'], params['ln1_b'], params['wi'], params['bi'],
      params['wd'], params['bd'], params['ln2_g'], params['ln2_b'])

    sequence_output = out.reshape(B, S, H)
    pooler_output = sequence_output[:, 0, :]   # DPR pooler = CLS hidden state
    return pooler_output


if __name__ == "__main__":
    key = jax.random.PRNGKey(0)
    pkey, ikey = jax.random.split(key)
    params = init_params(pkey)

    B, S = 2, 8
    input_ids = jax.random.randint(ikey, (B, S), 0, VOCAB, dtype=jnp.int32)
    attention_mask = jnp.ones((B, S), dtype=jnp.int32)

    fwd = jax.jit(dpr_context_encoder_forward)
    pooled = fwd(params, input_ids, attention_mask)
    pooled = jax.block_until_ready(pooled)
    assert pooled.shape == (B, HIDDEN) and pooled.dtype == jnp.float32
    print("KERNEL_OK")
</pallas_src>

<mosaic_0001>
module attributes {stable_mosaic.version = 11 : i64} {
  func.func @_dpr_encoder_kernel(%arg0: i32, %arg1: memref<16x128xf32, #tpu.memory_space<vmem>>, %arg2: memref<16x16xf32, #tpu.memory_space<vmem>>, %arg3: memref<1x128xf32, #tpu.memory_space<vmem>>, %arg4: memref<1x128xf32, #tpu.memory_space<vmem>>, %arg5: memref<1x128x384xbf16, #tpu.memory_space<vmem>>, %arg6: memref<1x1x384xf32, #tpu.memory_space<vmem>>, %arg7: memref<1x128x128xbf16, #tpu.memory_space<vmem>>, %arg8: memref<1x1x128xf32, #tpu.memory_space<vmem>>, %arg9: memref<1x1x128xf32, #tpu.memory_space<vmem>>, %arg10: memref<1x1x128xf32, #tpu.memory_space<vmem>>, %arg11: memref<1x128x256xbf16, #tpu.memory_space<vmem>>, %arg12: memref<1x1x256xf32, #tpu.memory_space<vmem>>, %arg13: memref<1x256x128xbf16, #tpu.memory_space<vmem>>, %arg14: memref<1x1x128xf32, #tpu.memory_space<vmem>>, %arg15: memref<1x1x128xf32, #tpu.memory_space<vmem>>, %arg16: memref<1x1x128xf32, #tpu.memory_space<vmem>>, %arg17: memref<16x128xf32, #tpu.memory_space<vmem>>, %arg18: memref<16x128xf32, #tpu.memory_space<vmem>>) attributes {dimension_semantics = [#tpu.dimension_semantics<arbitrary>], iteration_bounds = array<i64: 2>, scalar_prefetch = 0 : i64, scratch_operands = 1 : i64, tpu.core_type = #tpu.core_type<tc>, window_params = [{pipeline_mode = #tpu.pipeline_mode<synchronous>, transform_indices = @transform_0, window_bounds = array<i64: 16, 128>}, {pipeline_mode = #tpu.pipeline_mode<synchronous>, transform_indices = @transform_1, window_bounds = array<i64: 16, 16>}, {pipeline_mode = #tpu.pipeline_mode<synchronous>, transform_indices = @transform_2, window_bounds = array<i64: 1, 128>}, {pipeline_mode = #tpu.pipeline_mode<synchronous>, transform_indices = @transform_3, window_bounds = array<i64: 1, 128>}, {transform_indices = @transform_4, window_bounds = array<i64: 1, 128, 384>}, {transform_indices = @transform_5, window_bounds = array<i64: 1, 1, 384>}, {transform_indices = @transform_6, window_bounds = array<i64: 1, 128, 128>}, {transform_indices = @transform_7, window_bounds = array<i64: 1, 1, 128>}, {transform_indices = @transform_8, window_bounds = array<i64: 1, 1, 128>}, {transform_indices = @transform_9, window_bounds = array<i64: 1, 1, 128>}, {transform_indices = @transform_10, window_bounds = array<i64: 1, 128, 256>}, {transform_indices = @transform_11, window_bounds = array<i64: 1, 1, 256>}, {transform_indices = @transform_12, window_bounds = array<i64: 1, 256, 128>}, {transform_indices = @transform_13, window_bounds = array<i64: 1, 1, 128>}, {transform_indices = @transform_14, window_bounds = array<i64: 1, 1, 128>}, {transform_indices = @transform_15, window_bounds = array<i64: 1, 1, 128>}, {pipeline_mode = #tpu.pipeline_mode<synchronous>, transform_indices = @transform_16, window_bounds = array<i64: 16, 128>}]} {
    %c0_i32 = arith.constant 0 : i32
    %0 = arith.cmpi eq, %arg0, %c0_i32 : i32
    %1 = arith.extui %0 : i1 to i32
    %c0_i32_0 = arith.constant 0 : i32
    %2 = arith.cmpi ne, %1, %c0_i32_0 : i32
    scf.if %2 {
      %c0_80 = arith.constant 0 : index
      %c0_81 = arith.constant 0 : index
      %200 = vector.load %arg1[%c0_80, %c0_81] : memref<16x128xf32, #tpu.memory_space<vmem>>, vector<16x128xf32>
      %c0_82 = arith.constant 0 : index
      %c0_83 = arith.constant 0 : index
      %201 = vector.load %arg3[%c0_82, %c0_83] : memref<1x128xf32, #tpu.memory_space<vmem>>, vector<1x128xf32>
      %c0_84 = arith.constant 0 : index
      %c0_85 = arith.constant 0 : index
      %202 = vector.load %arg4[%c0_84, %c0_85] : memref<1x128xf32, #tpu.memory_space<vmem>>, vector<1x128xf32>
      %cst_86 = arith.constant dense<0.000000e+00> : vector<16xf32>
      %203 = vector.multi_reduction <add>, %200, %cst_86 [1] : vector<16x128xf32> to vector<16xf32>
      %204 = vector.shape_cast %203 : vector<16xf32> to vector<16x1xf32>
      %cst_87 = arith.constant 1.280000e+02 : f32
      %205 = vector.broadcast %cst_87 : f32 to vector<16x1xf32>
      %206 = arith.divf %204, %205 : vector<16x1xf32>
      %207 = vector.broadcast %206 : vector<16x1xf32> to vector<16x128xf32>
      %208 = arith.subf %200, %207 : vector<16x128xf32>
      %209 = arith.mulf %208, %208 : vector<16x128xf32>
      %cst_88 = arith.constant dense<0.000000e+00> : vector<16xf32>
      %210 = vector.multi_reduction <add>, %209, %cst_88 [1] : vector<16x128xf32> to vector<16xf32>
      %211 = vector.shape_cast %210 : vector<16xf32> to vector<16x1xf32>
      %cst_89 = arith.constant 1.280000e+02 : f32
      %212 = vector.broadcast %cst_89 : f32 to vector<16x1xf32>
      %213 = arith.divf %211, %212 : vector<16x1xf32>
      %214 = vector.broadcast %206 : vector<16x1xf32> to vector<16x128xf32>
      %215 = arith.subf %200, %214 : vector<16x128xf32>
      %cst_90 = arith.constant 9.99999996E-13 : f32
      %216 = vector.broadcast %cst_90 : f32 to vector<16x1xf32>
      %217 = arith.addf %213, %216 : vector<16x1xf32>
      %218 = math.rsqrt %217 : vector<16x1xf32>
      %219 = vector.broadcast %218 : vector<16x1xf32> to vector<16x128xf32>
      %220 = arith.mulf %215, %219 : vector<16x128xf32>
      %221 = vector.broadcast %201 : vector<1x128xf32> to vector<16x128xf32>
      %222 = arith.mulf %220, %221 : vector<16x128xf32>
      %223 = vector.broadcast %202 : vector<1x128xf32> to vector<16x128xf32>
      %224 = arith.addf %222, %223 : vector<16x128xf32>
      %c0_91 = arith.constant 0 : index
      %c0_92 = arith.constant 0 : index
      %225 = vector.load %arg18[%c0_91, %c0_92] : memref<16x128xf32, #tpu.memory_space<vmem>>, vector<16x128xf32>
      tpu.vector_store %arg18[%c0_91, %c0_92], %224 {strides = array<i32>} : memref<16x128xf32, #tpu.memory_space<vmem>>, vector<16x128xf32>,
    } else {
    }
    %c0 = arith.constant 0 : index
    %c0_1 = arith.constant 0 : index
    %3 = vector.load %arg18[%c0, %c0_1] : memref<16x128xf32, #tpu.memory_space<vmem>>, vector<16x128xf32>
    %4 = arith.truncf %3 : vector<16x128xf32> to vector<16x128xbf16>
    %c0_2 = arith.constant 0 : index
    %c0_3 = arith.constant 0 : index
    %c0_4 = arith.constant 0 : index
    %5 = vector.load %arg5[%c0_2, %c0_3, %c0_4] : memref<1x128x384xbf16, #tpu.memory_space<vmem>>, vector<1x128x384xbf16>
    %6 = vector.shape_cast %5 : vector<1x128x384xbf16> to vector<128x384xbf16>
    %cst = arith.constant dense<0.000000e+00> : vector<16x384xf32>
    %7 = tpu.matmul %4, %6, %cst {dimension_numbers = #tpu.dot_dimension_numbers<[1], [0], [0], [1], [0, 0, 1, 1], [], []>} : vector<16x128xbf16>, vector<128x384xbf16>, vector<16x384xf32> -> vector<16x384xf32>
    %c0_5 = arith.constant 0 : index
    %c0_6 = arith.constant 0 : index
    %c0_7 = arith.constant 0 : index
    %8 = vector.load %arg6[%c0_5, %c0_6, %c0_7] : memref<1x1x384xf32, #tpu.memory_space<vmem>>, vector<1x1x384xf32>
    %9 = vector.shape_cast %8 : vector<1x1x384xf32> to vector<1x384xf32>
    %10 = vector.broadcast %9 : vector<1x384xf32> to vector<16x384xf32>
    %11 = arith.addf %7, %10 : vector<16x384xf32>
    %12 = vector.extract_strided_slice %11 {offsets = [0, 0], sizes = [16, 128], strides = [1, 1]} : vector<16x384xf32> to vector<16x128xf32>
    %13 = vector.extract_strided_slice %11 {offsets = [0, 128], sizes = [16, 128], strides = [1, 1]} : vector<16x384xf32> to vector<16x128xf32>
    %14 = vector.extract_strided_slice %11 {offsets = [0, 256], sizes = [16, 128], strides = [1, 1]} : vector<16x384xf32> to vector<16x128xf32>
    %c0_8 = arith.constant 0 : index
    %c0_9 = arith.constant 0 : index
    %15 = vector.load %arg2[%c0_8, %c0_9] : memref<16x16xf32, #tpu.memory_space<vmem>>, vector<16x16xf32>
    %16 = vector.extract_strided_slice %12 {offsets = [0, 0], sizes = [16, 32], strides = [1, 1]} : vector<16x128xf32> to vector<16x32xf32>
    %17 = arith.truncf %16 : vector<16x32xf32> to vector<16x32xbf16>
    %18 = vector.extract_strided_slice %13 {offsets = [0, 0], sizes = [16, 32], strides = [1, 1]} : vector<16x128xf32> to vector<16x32xf32>
    %19 = arith.truncf %18 : vector<16x32xf32> to vector<16x32xbf16>
    %20 = vector.extract_strided_slice %14 {offsets = [0, 0], sizes = [16, 32], strides = [1, 1]} : vector<16x128xf32> to vector<16x32xf32>
    %21 = arith.truncf %20 : vector<16x32xf32> to vector<16x32xbf16>
    "tpu.trace_start"() <{level = 10 : i32, message = "qd,kd->qk"}> : () -> ()
    %cst_10 = arith.constant dense<0.000000e+00> : vector<16x16xf32>
    %22 = tpu.matmul %17, %19, %cst_10 {dimension_numbers = #tpu.dot_dimension_numbers<[1], [1], [0], [0], [0, 0, 1, 0], [], []>} : vector<16x32xbf16>, vector<16x32xbf16>, vector<16x16xf32> -> vector<16x16xf32>
    "tpu.trace_stop"() : () -> ()
    %cst_11 = arith.constant 0.176776692 : f32
    %23 = vector.broadcast %cst_11 : f32 to vector<16x16xf32>
    %24 = arith.mulf %22, %23 : vector<16x16xf32>
    %25 = arith.addf %24, %15 : vector<16x16xf32>
    %cst_12 = arith.constant dense<0xFF800000> : vector<16xf32>
    %26 = vector.multi_reduction <maximumf>, %25, %cst_12 [1] : vector<16x16xf32> to vector<16xf32>
    %27 = vector.shape_cast %26 : vector<16xf32> to vector<16x1xf32>
    %28 = vector.broadcast %27 : vector<16x1xf32> to vector<16x16xf32>
    %29 = arith.subf %25, %28 : vector<16x16xf32>
    %30 = math.exp %29 : vector<16x16xf32>
    %cst_13 = arith.constant dense<0.000000e+00> : vector<16xf32>
    %31 = vector.multi_reduction <add>, %30, %cst_13 [1] : vector<16x16xf32> to vector<16xf32>
    %32 = vector.shape_cast %31 : vector<16xf32> to vector<16x1xf32>
    %33 = tpu.reciprocal %32 {approx = true} : vector<16x1xf32> -> vector<16x1xf32>
    %34 = vector.broadcast %33 : vector<16x1xf32> to vector<16x16xf32>
    %35 = arith.mulf %30, %34 : vector<16x16xf32>
    %36 = arith.truncf %35 : vector<16x16xf32> to vector<16x16xbf16>
    %cst_14 = arith.constant dense<0.000000e+00> : vector<16x32xf32>
    %37 = tpu.matmul %36, %21, %cst_14 {dimension_numbers = #tpu.dot_dimension_numbers<[1], [0], [0], [1], [0, 0, 1, 1], [], []>} : vector<16x16xbf16>, vector<16x32xbf16>, vector<16x32xf32> -> vector<16x32xf32>
    %38 = vector.extract_strided_slice %12 {offsets = [0, 32], sizes = [16, 32], strides = [1, 1]} : vector<16x128xf32> to vector<16x32xf32>
    %39 = arith.truncf %38 : vector<16x32xf32> to vector<16x32xbf16>
    %40 = vector.extract_strided_slice %13 {offsets = [0, 32], sizes = [16, 32], strides = [1, 1]} : vector<16x128xf32> to vector<16x32xf32>
    %41 = arith.truncf %40 : vector<16x32xf32> to vector<16x32xbf16>
    %42 = vector.extract_strided_slice %14 {offsets = [0, 32], sizes = [16, 32], strides = [1, 1]} : vector<16x128xf32> to vector<16x32xf32>
    %43 = arith.truncf %42 : vector<16x32xf32> to vector<16x32xbf16>
    "tpu.trace_start"() <{level = 10 : i32, message = "qd,kd->qk"}> : () -> ()
    %cst_15 = arith.constant dense<0.000000e+00> : vector<16x16xf32>
    %44 = tpu.matmul %39, %41, %cst_15 {dimension_numbers = #tpu.dot_dimension_numbers<[1], [1], [0], [0], [0, 0, 1, 0], [], []>} : vector<16x32xbf16>, vector<16x32xbf16>, vector<16x16xf32> -> vector<16x16xf32>
    "tpu.trace_stop"() : () -> ()
    %cst_16 = arith.constant 0.176776692 : f32
    %45 = vector.broadcast %cst_16 : f32 to vector<16x16xf32>
    %46 = arith.mulf %44, %45 : vector<16x16xf32>
    %47 = arith.addf %46, %15 : vector<16x16xf32>
    %cst_17 = arith.constant dense<0xFF800000> : vector<16xf32>
    %48 = vector.multi_reduction <maximumf>, %47, %cst_17 [1] : vector<16x16xf32> to vector<16xf32>
    %49 = vector.shape_cast %48 : vector<16xf32> to vector<16x1xf32>
    %50 = vector.broadcast %49 : vector<16x1xf32> to vector<16x16xf32>
    %51 = arith.subf %47, %50 : vector<16x16xf32>
    %52 = math.exp %51 : vector<16x16xf32>
    %cst_18 = arith.constant dense<0.000000e+00> : vector<16xf32>
    %53 = vector.multi_reduction <add>, %52, %cst_18 [1] : vector<16x16xf32> to vector<16xf32>
    %54 = vector.shape_cast %53 : vector<16xf32> to vector<16x1xf32>
    %55 = tpu.reciprocal %54 {approx = true} : vector<16x1xf32> -> vector<16x1xf32>
    %56 = vector.broadcast %55 : vector<16x1xf32> to vector<16x16xf32>
    %57 = arith.mulf %52, %56 : vector<16x16xf32>
    %58 = arith.truncf %57 : vector<16x16xf32> to vector<16x16xbf16>
    %cst_19 = arith.constant dense<0.000000e+00> : vector<16x32xf32>
    %59 = tpu.matmul %58, %43, %cst_19 {dimension_numbers = #tpu.dot_dimension_numbers<[1], [0], [0], [1], [0, 0, 1, 1], [], []>} : vector<16x16xbf16>, vector<16x32xbf16>, vector<16x32xf32> -> vector<16x32xf32>
    %60 = vector.extract_strided_slice %12 {offsets = [0, 64], sizes = [16, 32], strides = [1, 1]} : vector<16x128xf32> to vector<16x32xf32>
    %61 = arith.truncf %60 : vector<16x32xf32> to vector<16x32xbf16>
    %62 = vector.extract_strided_slice %13 {offsets = [0, 64], sizes = [16, 32], strides = [1, 1]} : vector<16x128xf32> to vector<16x32xf32>
    %63 = arith.truncf %62 : vector<16x32xf32> to vector<16x32xbf16>
    %64 = vector.extract_strided_slice %14 {offsets = [0, 64], sizes = [16, 32], strides = [1, 1]} : vector<16x128xf32> to vector<16x32xf32>
    %65 = arith.truncf %64 : vector<16x32xf32> to vector<16x32xbf16>
    "tpu.trace_start"() <{level = 10 : i32, message = "qd,kd->qk"}> : () -> ()
    %cst_20 = arith.constant dense<0.000000e+00> : vector<16x16xf32>
    %66 = tpu.matmul %61, %63, %cst_20 {dimension_numbers = #tpu.dot_dimension_numbers<[1], [1], [0], [0], [0, 0, 1, 0], [], []>} : vector<16x32xbf16>, vector<16x32xbf16>, vector<16x16xf32> -> vector<16x16xf32>
    "tpu.trace_stop"() : () -> ()
    %cst_21 = arith.constant 0.176776692 : f32
    %67 = vector.broadcast %cst_21 : f32 to vector<16x16xf32>
    %68 = arith.mulf %66, %67 : vector<16x16xf32>
    %69 = arith.addf %68, %15 : vector<16x16xf32>
    %cst_22 = arith.constant dense<0xFF800000> : vector<16xf32>
    %70 = vector.multi_reduction <maximumf>, %69, %cst_22 [1] : vector<16x16xf32> to vector<16xf32>
    %71 = vector.shape_cast %70 : vector<16xf32> to vector<16x1xf32>
    %72 = vector.broadcast %71 : vector<16x1xf32> to vector<16x16xf32>
    %73 = arith.subf %69, %72 : vector<16x16xf32>
    %74 = math.exp %73 : vector<16x16xf32>
    %cst_23 = arith.constant dense<0.000000e+00> : vector<16xf32>
    %75 = vector.multi_reduction <add>, %74, %cst_23 [1] : vector<16x16xf32> to vector<16xf32>
    %76 = vector.shape_cast %75 : vector<16xf32> to vector<16x1xf32>
    %77 = tpu.reciprocal %76 {approx = true} : vector<16x1xf32> -> vector<16x1xf32>
    %78 = vector.broadcast %77 : vector<16x1xf32> to vector<16x16xf32>
    %79 = arith.mulf %74, %78 : vector<16x16xf32>
    %80 = arith.truncf %79 : vector<16x16xf32> to vector<16x16xbf16>
    %cst_24 = arith.constant dense<0.000000e+00> : vector<16x32xf32>
    %81 = tpu.matmul %80, %65, %cst_24 {dimension_numbers = #tpu.dot_dimension_numbers<[1], [0], [0], [1], [0, 0, 1, 1], [], []>} : vector<16x16xbf16>, vector<16x32xbf16>, vector<16x32xf32> -> vector<16x32xf32>
    %82 = vector.extract_strided_slice %12 {offsets = [0, 96], sizes = [16, 32], strides = [1, 1]} : vector<16x128xf32> to vector<16x32xf32>
    %83 = arith.truncf %82 : vector<16x32xf32> to vector<16x32xbf16>
    %84 = vector.extract_strided_slice %13 {offsets = [0, 96], sizes = [16, 32], strides = [1, 1]} : vector<16x128xf32> to vector<16x32xf32>
    %85 = arith.truncf %84 : vector<16x32xf32> to vector<16x32xbf16>
    %86 = vector.extract_strided_slice %14 {offsets = [0, 96], sizes = [16, 32], strides = [1, 1]} : vector<16x128xf32> to vector<16x32xf32>
    %87 = arith.truncf %86 : vector<16x32xf32> to vector<16x32xbf16>
    "tpu.trace_start"() <{level = 10 : i32, message = "qd,kd->qk"}> : () -> ()
    %cst_25 = arith.constant dense<0.000000e+00> : vector<16x16xf32>
    %88 = tpu.matmul %83, %85, %cst_25 {dimension_numbers = #tpu.dot_dimension_numbers<[1], [1], [0], [0], [0, 0, 1, 0], [], []>} : vector<16x32xbf16>, vector<16x32xbf16>, vector<16x16xf32> -> vector<16x16xf32>
    "tpu.trace_stop"() : () -> ()
    %cst_26 = arith.constant 0.176776692 : f32
    %89 = vector.broadcast %cst_26 : f32 to vector<16x16xf32>
    %90 = arith.mulf %88, %89 : vector<16x16xf32>
    %91 = arith.addf %90, %15 : vector<16x16xf32>
    %cst_27 = arith.constant dense<0xFF800000> : vector<16xf32>
    %92 = vector.multi_reduction <maximumf>, %91, %cst_27 [1] : vector<16x16xf32> to vector<16xf32>
    %93 = vector.shape_cast %92 : vector<16xf32> to vector<16x1xf32>
    %94 = vector.broadcast %93 : vector<16x1xf32> to vector<16x16xf32>
    %95 = arith.subf %91, %94 : vector<16x16xf32>
    %96 = math.exp %95 : vector<16x16xf32>
    %cst_28 = arith.constant dense<0.000000e+00> : vector<16xf32>
    %97 = vector.multi_reduction <add>, %96, %cst_28 [1] : vector<16x16xf32> to vector<16xf32>
    %98 = vector.shape_cast %97 : vector<16xf32> to vector<16x1xf32>
    %99 = tpu.reciprocal %98 {approx = true} : vector<16x1xf32> -> vector<16x1xf32>
    %100 = vector.broadcast %99 : vector<16x1xf32> to vector<16x16xf32>
    %101 = arith.mulf %96, %100 : vector<16x16xf32>
    %102 = arith.truncf %101 : vector<16x16xf32> to vector<16x16xbf16>
    %cst_29 = arith.constant dense<0.000000e+00> : vector<16x32xf32>
    %103 = tpu.matmul %102, %87, %cst_29 {dimension_numbers = #tpu.dot_dimension_numbers<[1], [0], [0], [1], [0, 0, 1, 1], [], []>} : vector<16x16xbf16>, vector<16x32xbf16>, vector<16x32xf32> -> vector<16x32xf32>
    %104 = tpu.concatenate %37, %59, %81, %103 in 1 : vector<16x32xf32>, vector<16x32xf32>, vector<16x32xf32>, vector<16x32xf32> -> vector<16x128xf32>
    %105 = arith.truncf %104 : vector<16x128xf32> to vector<16x128xbf16>
    %c0_30 = arith.constant 0 : index
    %c0_31 = arith.constant 0 : index
    %c0_32 = arith.constant 0 : index
    %106 = vector.load %arg7[%c0_30, %c0_31, %c0_32] : memref<1x128x128xbf16, #tpu.memory_space<vmem>>, vector<1x128x128xbf16>
    %107 = vector.shape_cast %106 : vector<1x128x128xbf16> to vector<128x128xbf16>
    %cst_33 = arith.constant dense<0.000000e+00> : vector<16x128xf32>
    %108 = tpu.matmul %105, %107, %cst_33 {dimension_numbers = #tpu.dot_dimension_numbers<[1], [0], [0], [1], [0, 0, 1, 1], [], []>} : vector<16x128xbf16>, vector<128x128xbf16>, vector<16x128xf32> -> vector<16x128xf32>
    %c0_34 = arith.constant 0 : index
    %c0_35 = arith.constant 0 : index
    %c0_36 = arith.constant 0 : index
    %109 = vector.load %arg8[%c0_34, %c0_35, %c0_36] : memref<1x1x128xf32, #tpu.memory_space<vmem>>, vector<1x1x128xf32>
    %110 = vector.shape_cast %109 : vector<1x1x128xf32> to vector<1x128xf32>
    %111 = vector.broadcast %110 : vector<1x128xf32> to vector<16x128xf32>
    %112 = arith.addf %108, %111 : vector<16x128xf32>
    %113 = arith.addf %112, %3 : vector<16x128xf32>
    %c0_37 = arith.constant 0 : index
    %c0_38 = arith.constant 0 : index
    %c0_39 = arith.constant 0 : index
    %114 = vector.load %arg9[%c0_37, %c0_38, %c0_39] : memref<1x1x128xf32, #tpu.memory_space<vmem>>, vector<1x1x128xf32>
    %115 = vector.shape_cast %114 : vector<1x1x128xf32> to vector<1x128xf32>
    %c0_40 = arith.constant 0 : index
    %c0_41 = arith.constant 0 : index
    %c0_42 = arith.constant 0 : index
    %116 = vector.load %arg10[%c0_40, %c0_41, %c0_42] : memref<1x1x128xf32, #tpu.memory_space<vmem>>, vector<1x1x128xf32>
    %117 = vector.shape_cast %116 : vector<1x1x128xf32> to vector<1x128xf32>
    %cst_43 = arith.constant dense<0.000000e+00> : vector<16xf32>
    %118 = vector.multi_reduction <add>, %113, %cst_43 [1] : vector<16x128xf32> to vector<16xf32>
    %119 = vector.shape_cast %118 : vector<16xf32> to vector<16x1xf32>
    %cst_44 = arith.constant 1.280000e+02 : f32
    %120 = vector.broadcast %cst_44 : f32 to vector<16x1xf32>
    %121 = arith.divf %119, %120 : vector<16x1xf32>
    %122 = vector.broadcast %121 : vector<16x1xf32> to vector<16x128xf32>
    %123 = arith.subf %113, %122 : vector<16x128xf32>
    %124 = arith.mulf %123, %123 : vector<16x128xf32>
    %cst_45 = arith.constant dense<0.000000e+00> : vector<16xf32>
    %125 = vector.multi_reduction <add>, %124, %cst_45 [1] : vector<16x128xf32> to vector<16xf32>
    %126 = vector.shape_cast %125 : vector<16xf32> to vector<16x1xf32>
    %cst_46 = arith.constant 1.280000e+02 : f32
    %127 = vector.broadcast %cst_46 : f32 to vector<16x1xf32>
    %128 = arith.divf %126, %127 : vector<16x1xf32>
    %129 = vector.broadcast %121 : vector<16x1xf32> to vector<16x128xf32>
    %130 = arith.subf %113, %129 : vector<16x128xf32>
    %cst_47 = arith.constant 9.99999996E-13 : f32
    %131 = vector.broadcast %cst_47 : f32 to vector<16x1xf32>
    %132 = arith.addf %128, %131 : vector<16x1xf32>
    %133 = math.rsqrt %132 : vector<16x1xf32>
    %134 = vector.broadcast %133 : vector<16x1xf32> to vector<16x128xf32>
    %135 = arith.mulf %130, %134 : vector<16x128xf32>
    %136 = vector.broadcast %115 : vector<1x128xf32> to vector<16x128xf32>
    %137 = arith.mulf %135, %136 : vector<16x128xf32>
    %138 = vector.broadcast %117 : vector<1x128xf32> to vector<16x128xf32>
    %139 = arith.addf %137, %138 : vector<16x128xf32>
    %140 = arith.truncf %139 : vector<16x128xf32> to vector<16x128xbf16>
    %c0_48 = arith.constant 0 : index
    %c0_49 = arith.constant 0 : index
    %c0_50 = arith.constant 0 : index
    %141 = vector.load %arg11[%c0_48, %c0_49, %c0_50] : memref<1x128x256xbf16, #tpu.memory_space<vmem>>, vector<1x128x256xbf16>
    %142 = vector.shape_cast %141 : vector<1x128x256xbf16> to vector<128x256xbf16>
    %cst_51 = arith.constant dense<0.000000e+00> : vector<16x256xf32>
    %143 = tpu.matmul %140, %142, %cst_51 {dimension_numbers = #tpu.dot_dimension_numbers<[1], [0], [0], [1], [0, 0, 1, 1], [], []>} : vector<16x128xbf16>, vector<128x256xbf16>, vector<16x256xf32> -> vector<16x256xf32>
    %c0_52 = arith.constant 0 : index
    %c0_53 = arith.constant 0 : index
    %c0_54 = arith.constant 0 : index
    %144 = vector.load %arg12[%c0_52, %c0_53, %c0_54] : memref<1x1x256xf32, #tpu.memory_space<vmem>>, vector<1x1x256xf32>
    %145 = vector.shape_cast %144 : vector<1x1x256xf32> to vector<1x256xf32>
    %146 = vector.broadcast %145 : vector<1x256xf32> to vector<16x256xf32>
    %147 = arith.addf %143, %146 : vector<16x256xf32>
    %cst_55 = arith.constant 5.000000e-01 : f32
    %148 = vector.broadcast %cst_55 : f32 to vector<16x256xf32>
    %149 = arith.mulf %148, %147 : vector<16x256xf32>
    %cst_56 = arith.constant 4.471500e-02 : f32
    %150 = vector.broadcast %cst_56 : f32 to vector<16x256xf32>
    %151 = arith.mulf %150, %147 : vector<16x256xf32>
    %152 = arith.mulf %151, %147 : vector<16x256xf32>
    %153 = arith.mulf %152, %147 : vector<16x256xf32>
    %154 = arith.addf %147, %153 : vector<16x256xf32>
    %cst_57 = arith.constant 0.797884583 : f32
    %155 = vector.broadcast %cst_57 : f32 to vector<16x256xf32>
    %156 = arith.mulf %155, %154 : vector<16x256xf32>
    %157 = math.tanh %156 : vector<16x256xf32>
    %cst_58 = arith.constant 1.000000e+00 : f32
    %158 = vector.broadcast %cst_58 : f32 to vector<16x256xf32>
    %159 = arith.addf %158, %157 : vector<16x256xf32>
    %160 = arith.mulf %149, %159 : vector<16x256xf32>
    %161 = arith.truncf %160 : vector<16x256xf32> to vector<16x256xbf16>
    %c0_59 = arith.constant 0 : index
    %c0_60 = arith.constant 0 : index
    %c0_61 = arith.constant 0 : index
    %162 = vector.load %arg13[%c0_59, %c0_60, %c0_61] : memref<1x256x128xbf16, #tpu.memory_space<vmem>>, vector<1x256x128xbf16>
    %163 = vector.shape_cast %162 : vector<1x256x128xbf16> to vector<256x128xbf16>
    %cst_62 = arith.constant dense<0.000000e+00> : vector<16x128xf32>
    %164 = tpu.matmul %161, %163, %cst_62 {dimension_numbers = #tpu.dot_dimension_numbers<[1], [0], [0], [1], [0, 0, 1, 1], [], []>} : vector<16x256xbf16>, vector<256x128xbf16>, vector<16x128xf32> -> vector<16x128xf32>
    %c0_63 = arith.constant 0 : index
    %c0_64 = arith.constant 0 : index
    %c0_65 = arith.constant 0 : index
    %165 = vector.load %arg14[%c0_63, %c0_64, %c0_65] : memref<1x1x128xf32, #tpu.memory_space<vmem>>, vector<1x1x128xf32>
    %166 = vector.shape_cast %165 : vector<1x1x128xf32> to vector<1x128xf32>
    %167 = vector.broadcast %166 : vector<1x128xf32> to vector<16x128xf32>
    %168 = arith.addf %164, %167 : vector<16x128xf32>
    %169 = arith.addf %168, %139 : vector<16x128xf32>
    %c0_66 = arith.constant 0 : index
    %c0_67 = arith.constant 0 : index
    %c0_68 = arith.constant 0 : index
    %170 = vector.load %arg15[%c0_66, %c0_67, %c0_68] : memref<1x1x128xf32, #tpu.memory_space<vmem>>, vector<1x1x128xf32>
    %171 = vector.shape_cast %170 : vector<1x1x128xf32> to vector<1x128xf32>
    %c0_69 = arith.constant 0 : index
    %c0_70 = arith.constant 0 : index
    %c0_71 = arith.constant 0 : index
    %172 = vector.load %arg16[%c0_69, %c0_70, %c0_71] : memref<1x1x128xf32, #tpu.memory_space<vmem>>, vector<1x1x128xf32>
    %173 = vector.shape_cast %172 : vector<1x1x128xf32> to vector<1x128xf32>
    %cst_72 = arith.constant dense<0.000000e+00> : vector<16xf32>
    %174 = vector.multi_reduction <add>, %169, %cst_72 [1] : vector<16x128xf32> to vector<16xf32>
    %175 = vector.shape_cast %174 : vector<16xf32> to vector<16x1xf32>
    %cst_73 = arith.constant 1.280000e+02 : f32
    %176 = vector.broadcast %cst_73 : f32 to vector<16x1xf32>
    %177 = arith.divf %175, %176 : vector<16x1xf32>
    %178 = vector.broadcast %177 : vector<16x1xf32> to vector<16x128xf32>
    %179 = arith.subf %169, %178 : vector<16x128xf32>
    %180 = arith.mulf %179, %179 : vector<16x128xf32>
    %cst_74 = arith.constant dense<0.000000e+00> : vector<16xf32>
    %181 = vector.multi_reduction <add>, %180, %cst_74 [1] : vector<16x128xf32> to vector<16xf32>
    %182 = vector.shape_cast %181 : vector<16xf32> to vector<16x1xf32>
    %cst_75 = arith.constant 1.280000e+02 : f32
    %183 = vector.broadcast %cst_75 : f32 to vector<16x1xf32>
    %184 = arith.divf %182, %183 : vector<16x1xf32>
    %185 = vector.broadcast %177 : vector<16x1xf32> to vector<16x128xf32>
    %186 = arith.subf %169, %185 : vector<16x128xf32>
    %cst_76 = arith.constant 9.99999996E-13 : f32
    %187 = vector.broadcast %cst_76 : f32 to vector<16x1xf32>
    %188 = arith.addf %184, %187 : vector<16x1xf32>
    %189 = math.rsqrt %188 : vector<16x1xf32>
    %190 = vector.broadcast %189 : vector<16x1xf32> to vector<16x128xf32>
    %191 = arith.mulf %186, %190 : vector<16x128xf32>
    %192 = vector.broadcast %171 : vector<1x128xf32> to vector<16x128xf32>
    %193 = arith.mulf %191, %192 : vector<16x128xf32>
    %194 = vector.broadcast %173 : vector<1x128xf32> to vector<16x128xf32>
    %195 = arith.addf %193, %194 : vector<16x128xf32>
    %c0_77 = arith.constant 0 : index
    %c0_78 = arith.constant 0 : index
    %196 = vector.load %arg18[%c0_77, %c0_78] : memref<16x128xf32, #tpu.memory_space<vmem>>, vector<16x128xf32>
    tpu.vector_store %arg18[%c0_77, %c0_78], %195 {strides = array<i32>} : memref<16x128xf32, #tpu.memory_space<vmem>>, vector<16x128xf32>,
    %c1_i32 = arith.constant 1 : i32
    %197 = arith.cmpi eq, %arg0, %c1_i32 : i32
    %198 = arith.extui %197 : i1 to i32
    %c0_i32_79 = arith.constant 0 : i32
    %199 = arith.cmpi ne, %198, %c0_i32_79 : i32
    scf.if %199 {
      %c0_80 = arith.constant 0 : index
      %c0_81 = arith.constant 0 : index
      %200 = vector.load %arg17[%c0_80, %c0_81] : memref<16x128xf32, #tpu.memory_space<vmem>>, vector<16x128xf32>
      tpu.vector_store %arg17[%c0_80, %c0_81], %195 {strides = array<i32>} : memref<16x128xf32, #tpu.memory_space<vmem>>, vector<16x128xf32>,
    } else {
    }
    return
  }
  func.func @transform_0(%arg0: i32) -> (i32, i32) {
    %c0_i32 = arith.constant 0 : i32
    %c0_i32_0 = arith.constant 0 : i32
    %c0_i32_1 = arith.constant 0 : i32
    return %c0_i32, %c0_i32_0 : i32, i32
  }
  func.func @transform_1(%arg0: i32) -> (i32, i32) {
    %c0_i32 = arith.constant 0 : i32
    %c0_i32_0 = arith.constant 0 : i32
    %c0_i32_1 = arith.constant 0 : i32
    return %c0_i32, %c0_i32_0 : i32, i32
  }
  func.func @transform_2(%arg0: i32) -> (i32, i32) {
    %c0_i32 = arith.constant 0 : i32
    %c0_i32_0 = arith.constant 0 : i32
    %c0_i32_1 = arith.constant 0 : i32
    return %c0_i32, %c0_i32_0 : i32, i32
  }
  func.func @transform_3(%arg0: i32) -> (i32, i32) {
    %c0_i32 = arith.constant 0 : i32
    %c0_i32_0 = arith.constant 0 : i32
    %c0_i32_1 = arith.constant 0 : i32
    return %c0_i32, %c0_i32_0 : i32, i32
  }
  func.func @transform_4(%arg0: i32) -> (i32, i32, i32) {
    %c0_i32 = arith.constant 0 : i32
    %c0_i32_0 = arith.constant 0 : i32
    %c0_i32_1 = arith.constant 0 : i32
    return %arg0, %c0_i32, %c0_i32_0 : i32, i32, i32
  }
  func.func @transform_5(%arg0: i32) -> (i32, i32, i32) {
    %c0_i32 = arith.constant 0 : i32
    %c0_i32_0 = arith.constant 0 : i32
    %c0_i32_1 = arith.constant 0 : i32
    return %arg0, %c0_i32, %c0_i32_0 : i32, i32, i32
  }
  func.func @transform_6(%arg0: i32) -> (i32, i32, i32) {
    %c0_i32 = arith.constant 0 : i32
    %c0_i32_0 = arith.constant 0 : i32
    %c0_i32_1 = arith.constant 0 : i32
    return %arg0, %c0_i32, %c0_i32_0 : i32, i32, i32
  }
  func.func @transform_7(%arg0: i32) -> (i32, i32, i32) {
    %c0_i32 = arith.constant 0 : i32
    %c0_i32_0 = arith.constant 0 : i32
    %c0_i32_1 = arith.constant 0 : i32
    return %arg0, %c0_i32, %c0_i32_0 : i32, i32, i32
  }
  func.func @transform_8(%arg0: i32) -> (i32, i32, i32) {
    %c0_i32 = arith.constant 0 : i32
    %c0_i32_0 = arith.constant 0 : i32
    %c0_i32_1 = arith.constant 0 : i32
    return %arg0, %c0_i32, %c0_i32_0 : i32, i32, i32
  }
  func.func @transform_9(%arg0: i32) -> (i32, i32, i32) {
    %c0_i32 = arith.constant 0 : i32
    %c0_i32_0 = arith.constant 0 : i32
    %c0_i32_1 = arith.constant 0 : i32
    return %arg0, %c0_i32, %c0_i32_0 : i32, i32, i32
  }
  func.func @transform_10(%arg0: i32) -> (i32, i32, i32) {
    %c0_i32 = arith.constant 0 : i32
    %c0_i32_0 = arith.constant 0 : i32
    %c0_i32_1 = arith.constant 0 : i32
    return %arg0, %c0_i32, %c0_i32_0 : i32, i32, i32
  }
  func.func @transform_11(%arg0: i32) -> (i32, i32, i32) {
    %c0_i32 = arith.constant 0 : i32
    %c0_i32_0 = arith.constant 0 : i32
    %c0_i32_1 = arith.constant 0 : i32
    return %arg0, %c0_i32, %c0_i32_0 : i32, i32, i32
  }
  func.func @transform_12(%arg0: i32) -> (i32, i32, i32) {
    %c0_i32 = arith.constant 0 : i32
    %c0_i32_0 = arith.constant 0 : i32
    %c0_i32_1 = arith.constant 0 : i32
    return %arg0, %c0_i32, %c0_i32_0 : i32, i32, i32
  }
  func.func @transform_13(%arg0: i32) -> (i32, i32, i32) {
    %c0_i32 = arith.constant 0 : i32
    %c0_i32_0 = arith.constant 0 : i32
    %c0_i32_1 = arith.constant 0 : i32
    return %arg0, %c0_i32, %c0_i32_0 : i32, i32, i32
  }
  func.func @transform_14(%arg0: i32) -> (i32, i32, i32) {
    %c0_i32 = arith.constant 0 : i32
    %c0_i32_0 = arith.constant 0 : i32
    %c0_i32_1 = arith.constant 0 : i32
    return %arg0, %c0_i32, %c0_i32_0 : i32, i32, i32
  }
  func.func @transform_15(%arg0: i32) -> (i32, i32, i32) {
    %c0_i32 = arith.constant 0 : i32
    %c0_i32_0 = arith.constant 0 : i32
    %c0_i32_1 = arith.constant 0 : i32
    return %arg0, %c0_i32, %c0_i32_0 : i32, i32, i32
  }
  func.func @transform_16(%arg0: i32) -> (i32, i32) {
    %c0_i32 = arith.constant 0 : i32
    %c0_i32_0 = arith.constant 0 : i32
    %c0_i32_1 = arith.constant 0 : i32
    return %c0_i32, %c0_i32_0 : i32, i32
  }
}

</mosaic_0001>

<llo_original>
// kernel: dpr_context_encoder_forward.1
$region0: #{dpr_context_encoder_forward.1}
  #allocation0 [shape = 'u32[]', space=smem, size = 0x4, offset = 0x4, fixed_abs, tag = 'smem constant byte address 0x4 - core index']
  #allocation1 [shape = 'u32[144,128]{1,0:T(1,128)}', space=vmem, size = 0x12000, scoped, tag = 'internal scratch']
  #allocation2 [shape = 'f32[16,128]{1,0:T(8,128)}', space=vmem, size = 0x2000, scoped, tag = 'scratch operand']
  %s0 = inlined_call_operand.vmem [shape: f32[16,128], index: 0, kind: input, shape index: {}]
  %s1 = inlined_call_operand.vmem [shape: f32[16,16], index: 1, kind: input, shape index: {}]
  %s2 = inlined_call_operand.hbm [shape: f32[1,128], index: 2, kind: input, shape index: {}]
  %s3 = inlined_call_operand.hbm [shape: f32[1,128], index: 3, kind: input, shape index: {}]
  %s4 = inlined_call_operand.vmem [shape: bf16[2,128,384], index: 4, kind: input, shape index: {}]
  %s5 = inlined_call_operand.hbm [shape: f32[2,1,384], index: 5, kind: input, shape index: {}]
  %s6 = inlined_call_operand.hbm [shape: bf16[2,128,128], index: 6, kind: input, shape index: {}]
  %s7 = inlined_call_operand.hbm [shape: f32[2,1,128], index: 7, kind: input, shape index: {}]
  %s8 = inlined_call_operand.hbm [shape: f32[2,1,128], index: 8, kind: input, shape index: {}]
  %s9 = inlined_call_operand.hbm [shape: f32[2,1,128], index: 9, kind: input, shape index: {}]
  %s10 = inlined_call_operand.hbm [shape: bf16[2,128,256], index: 10, kind: input, shape index: {}]
  %s11 = inlined_call_operand.vmem [shape: f32[2,1,256], index: 11, kind: input, shape index: {}]
  %s12 = inlined_call_operand.hbm [shape: bf16[2,256,128], index: 12, kind: input, shape index: {}]
  %s13 = inlined_call_operand.hbm [shape: f32[2,1,128], index: 13, kind: input, shape index: {}]
  %s14 = inlined_call_operand.hbm [shape: f32[2,1,128], index: 14, kind: input, shape index: {}]
  %s15 = inlined_call_operand.hbm [shape: f32[2,1,128], index: 15, kind: input, shape index: {}]
  %s16 = inlined_call_operand.vmem [shape: f32[16,128], index: 16, kind: output, shape index: {}]
  %s17 = sld [smem:[#allocation0]]
  $region153: #{dpr_context_encoder_forward.1} parent=0
    _
  %s19 = ssub.s32 1, %s17
  %s20 = scalar_select 0, %s19, %s17
  $region1: #{dpr_context_encoder_forward.1} parent=0
    #allocation3 [shape = 'u8[512]{0}', space=vmem, size = 0x400, scoped, tag = 'input window, operand 2, single buffered']
    #allocation4 [shape = 's32[2]{0}', space=sflag, size = 0x8, scoped, tag = 'scoped memory for dpr_context_encoder_forward.1']
    #allocation5 [shape = 'u8[512]{0}', space=vmem, size = 0x400, scoped, tag = 'input window, operand 3, single buffered']
    #allocation6 [shape = 's32[1]{0}', space=sflag, size = 0x4, scoped, tag = 'scoped memory for dpr_context_encoder_forward.1']
    #allocation7 [shape = 'u8[3072]{0}', space=vmem, size = 0xc00, scoped, tag = 'input window, operand 5']
    #allocation8 [shape = 'u8[65536]{0}', space=vmem, size = 0x10000, scoped, tag = 'input window, operand 6']
    #allocation9 [shape = 'u8[1024]{0}', space=vmem, size = 0x400, scoped, tag = 'input window, operand 7']
    #allocation10 [shape = 'u8[1024]{0}', space=vmem, size = 0x400, scoped, tag = 'input window, operand 8']
    #allocation11 [shape = 'u8[1024]{0}', space=vmem, size = 0x400, scoped, tag = 'input window, operand 9']
    #allocation12 [shape = 'u8[131072]{0}', space=vmem, size = 0x20000, scoped, tag = 'input window, operand 10']
    #allocation13 [shape = 'u8[131072]{0}', space=vmem, size = 0x20000, scoped, tag = 'input window, operand 12']
    #allocation14 [shape = 'u8[1024]{0}', space=vmem, size = 0x400, scoped, tag = 'input window, operand 13']
    #allocation15 [shape = 'u8[1024]{0}', space=vmem, size = 0x400, scoped, tag = 'input window, operand 14']
    #allocation16 [shape = 'u8[1024]{0}', space=vmem, size = 0x400, scoped, tag = 'input window, operand 15']
    %21 = vsyncpa [#allocation4], 0
    %22 = vsyncpa [#allocation6], 0
    loop: start=0, step=1, limit=4
    $region2: #{dpr_context_encoder_forward.1} parent=1 // loop_pre_header
      _
    $region3: #{dpr_context_encoder_forward.1} parent=1 // loop_header
      %s24 = sphi 0, %s28
      %p25 = scmp.ge.s32.totalorder %s24, 4
      %s32 = sphi 0, %s32
      %s34 = sphi 0, %s32
      %s35 = sphi 0, %s34
      %s49 = sphi 0, %s35
      %s53 = sphi 0, %s53
      %s55 = sphi 0, %s53
      %s56 = sphi 0, %s55
      %s70 = sphi 0, %s56
      %s74 = sphi 0, %s74
      %s76 = sphi 0, %s74
      %s77 = sphi 0, %s76
      %s91 = sphi 0, %s77
      %s95 = sphi 0, %s95
      %s97 = sphi 0, %s95
      %s98 = sphi 0, %s97
      %s112 = sphi 0, %s98
      %s118 = sphi 0, %s120
      %s121 = sphi 0, %s118
      %s122 = sphi 0, %s121
      %s138 = sphi 0, %s122
      %s144 = sphi 0, %s146
      %s147 = sphi 0, %s144
      %s148 = sphi 0, %s147
      %s164 = sphi 0, %s148
      %s170 = sphi 0, %s172
      %s173 = sphi 0, %s170
      %s174 = sphi 0, %s173
      %s190 = sphi 0, %s174
      %s196 = sphi 0, %s198
      %s199 = sphi 0, %s196
      %s200 = sphi 0, %s199
      %s216 = sphi 0, %s200
      %s222 = sphi 0, %s224
      %s225 = sphi 0, %s222
      %s226 = sphi 0, %s225
      %s242 = sphi 0, %s226
      %s248 = sphi 0, %s250
      %s251 = sphi 0, %s248
      %s252 = sphi 0, %s251
      %s268 = sphi 0, %s252
      %s274 = sphi 0, %s276
      %s277 = sphi 0, %s274
      %s278 = sphi 0, %s277
      %s294 = sphi 0, %s278
      %s300 = sphi 0, %s302
      %s303 = sphi 0, %s300
      %s304 = sphi 0, %s303
      %s320 = sphi 0, %s304
      %s326 = sphi 0, %s328
      %s329 = sphi 0, %s326
      %s330 = sphi 0, %s329
      %s346 = sphi 0, %s330
      %s352 = sphi 0, %s354
      %s355 = sphi 0, %s352
      %s356 = sphi 0, %s355
      %s372 = sphi 0, %s356
      %s378 = sphi 0, %s380
      %s381 = sphi 0, %s378
      %s382 = sphi 0, %s381
      %s398 = sphi 0, %s382
      %s404 = sphi 0, %s406
      %s407 = sphi 0, %s404
      %s408 = sphi 0, %s407
      %s424 = sphi 0, %s408
      %s428 = sphi 0, %s428
      %s430 = sphi 0, %s428
      %s431 = sphi 0, %s430
      %s445 = sphi 0, %s431
    $region4: #{dpr_context_encoder_forward.1} parent=1 // loop_header_branch
      %27 = sbr.rel (%p25) target = $region8
    $region5: #{dpr_context_encoder_forward.1} parent=1 // loop_body
      %s29 = ssub.s32 %s24, 1
      %s30 = ssub.s32 %s24, 2
      %s31 = sadd.s32 %s24, 1
      %s33 = sadd.s32 %s32, 1
      %p36 = scmp.eq.s32.totalorder %s24, 1
      %p37 = scmp.ne.s32.totalorder %s32, %s34
      %p38 = scmp.eq.s32.totalorder %s24, 0
      %p39 = por %p37, %p38
      %p40 = scmp.ne.s32.totalorder %s32, %s34
      %p41 = scmp.eq.s32.totalorder %s29, 1
      %p42 = por %p40, %p41
      %p43 = scmp.ne.s32.totalorder %s34, %s35
      %p44 = scmp.eq.s32.totalorder %s29, 0
      %p45 = por %p43, %p44
      %p46 = scmp.ne.s32.totalorder %s34, %s35
      %p47 = scmp.eq.s32.totalorder %s30, 1
      %p48 = por %p46, %p47
      %p50 = scmp.ne.s32.totalorder %s35, %s49
      %p51 = scmp.eq.s32.totalorder %s30, 0
      %p52 = por %p50, %p51
      %s54 = sadd.s32 %s53, 1
      %p57 = scmp.eq.s32.totalorder %s24, 1
      %p58 = scmp.ne.s32.totalorder %s53, %s55
      %p59 = scmp.eq.s32.totalorder %s24, 0
      %p60 = por %p58, %p59
      %p61 = scmp.ne.s32.totalorder %s53, %s55
      %p62 = scmp.eq.s32.totalorder %s29, 1
      %p63 = por %p61, %p62
      %p64 = scmp.ne.s32.totalorder %s55, %s56
      %p65 = scmp.eq.s32.totalorder %s29, 0
      %p66 = por %p64, %p65
      %p67 = scmp.ne.s32.totalorder %s55, %s56
      %p68 = scmp.eq.s32.totalorder %s30, 1
      %p69 = por %p67, %p68
      %p71 = scmp.ne.s32.totalorder %s56, %s70
      %p72 = scmp.eq.s32.totalorder %s30, 0
      %p73 = por %p71, %p72
      %s75 = sadd.s32 %s74, 1
      %p78 = scmp.eq.s32.totalorder %s24, 1
      %p79 = scmp.ne.s32.totalorder %s74, %s76
      %p80 = scmp.eq.s32.totalorder %s24, 0
      %p81 = por %p79, %p80
      %p82 = scmp.ne.s32.totalorder %s74, %s76
      %p83 = scmp.eq.s32.totalorder %s29, 1
      %p84 = por %p82, %p83
      %p85 = scmp.ne.s32.totalorder %s76, %s77
      %p86 = scmp.eq.s32.totalorder %s29, 0
      %p87 = por %p85, %p86
      %p88 = scmp.ne.s32.totalorder %s76, %s77
      %p89 = scmp.eq.s32.totalorder %s30, 1
      %p90 = por %p88, %p89
      %p92 = scmp.ne.s32.totalorder %s77, %s91
      %p93 = scmp.eq.s32.totalorder %s30, 0
      %p94 = por %p92, %p93
      %s96 = sadd.s32 %s95, 1
      %p99 = scmp.eq.s32.totalorder %s24, 1
      %p100 = scmp.ne.s32.totalorder %s95, %s97
      %p101 = scmp.eq.s32.totalorder %s24, 0
      %p102 = por %p100, %p101
      %p103 = scmp.ne.s32.totalorder %s95, %s97
      %p104 = scmp.eq.s32.totalorder %s29, 1
      %p105 = por %p103, %p104
      %p106 = scmp.ne.s32.totalorder %s97, %s98
      %p107 = scmp.eq.s32.totalorder %s29, 0
      %p108 = por %p106, %p107
      %p109 = scmp.ne.s32.totalorder %s97, %s98
      %p110 = scmp.eq.s32.totalorder %s30, 1
      %p111 = por %p109, %p110
      %p113 = scmp.ne.s32.totalorder %s98, %s112
      %p114 = scmp.eq.s32.totalorder %s30, 0
      %p115 = por %p113, %p114
      %s116 = ssub.s32 %s24, %s31
      %p117 = scmp.eq.s32.totalorder %s116, 0
      %s119 = sadd.s32 %s118, 1
      %s120 = scalar_select %p117, %s118, %s119
      %p123 = pneg %p117
      %p124 = scmp.eq.s32.totalorder %s24, 1
      %p125 = por %p123, %p124
      %p126 = scmp.ne.s32.totalorder %s118, %s121
      %p127 = scmp.eq.s32.totalorder %s24, 0
      %p128 = por %p126, %p127
      %p129 = scmp.ne.s32.totalorder %s118, %s121
      %p130 = scmp.eq.s32.totalorder %s29, 1
      %p131 = por %p129, %p130
      %p132 = scmp.ne.s32.totalorder %s121, %s122
      %p133 = scmp.eq.s32.totalorder %s29, 0
      %p134 = por %p132, %p133
      %p135 = scmp.ne.s32.totalorder %s121, %s122
      %p136 = scmp.eq.s32.totalorder %s30, 1
      %p137 = por %p135, %p136
      %p139 = scmp.ne.s32.totalorder %s122, %s138
      %p140 = scmp.eq.s32.totalorder %s30, 0
      %p141 = por %p139, %p140
      %s142 = ssub.s32 %s24, %s31
      %p143 = scmp.eq.s32.totalorder %s142, 0
      %s145 = sadd.s32 %s144, 1
      %s146 = scalar_select %p143, %s144, %s145
      %p149 = pneg %p143
      %p150 = scmp.eq.s32.totalorder %s24, 1
      %p151 = por %p149, %p150
      %p152 = scmp.ne.s32.totalorder %s144, %s147
      %p153 = scmp.eq.s32.totalorder %s24, 0
      %p154 = por %p152, %p153
      %p155 = scmp.ne.s32.totalorder %s144, %s147
      %p156 = scmp.eq.s32.totalorder %s29, 1
      %p157 = por %p155, %p156
      %p158 = scmp.ne.s32.totalorder %s147, %s148
      %p159 = scmp.eq.s32.totalorder %s29, 0
      %p160 = por %p158, %p159
      %p161 = scmp.ne.s32.totalorder %s147, %s148
      %p162 = scmp.eq.s32.totalorder %s30, 1
      %p163 = por %p161, %p162
      %p165 = scmp.ne.s32.totalorder %s148, %s164
      %p166 = scmp.eq.s32.totalorder %s30, 0
      %p167 = por %p165, %p166
      %s168 = ssub.s32 %s24, %s31
      %p169 = scmp.eq.s32.totalorder %s168, 0
      %s171 = sadd.s32 %s170, 1
      %s172 = scalar_select %p169, %s170, %s171
      %p175 = pneg %p169
      %p176 = scmp.eq.s32.totalorder %s24, 1
      %p177 = por %p175, %p176
      %p178 = scmp.ne.s32.totalorder %s170, %s173
      %p179 = scmp.eq.s32.totalorder %s24, 0
      %p180 = por %p178, %p179
      %p181 = scmp.ne.s32.totalorder %s170, %s173
      %p182 = scmp.eq.s32.totalorder %s29, 1
      %p183 = por %p181, %p182
      %p184 = scmp.ne.s32.totalorder %s173, %s174
      %p185 = scmp.eq.s32.totalorder %s29, 0
      %p186 = por %p184, %p185
      %p187 = scmp.ne.s32.totalorder %s173, %s174
      %p188 = scmp.eq.s32.totalorder %s30, 1
      %p189 = por %p187, %p188
      %p191 = scmp.ne.s32.totalorder %s174, %s190
      %p192 = scmp.eq.s32.totalorder %s30, 0
      %p193 = por %p191, %p192
      %s194 = ssub.s32 %s24, %s31
      %p195 = scmp.eq.s32.totalorder %s194, 0
      %s197 = sadd.s32 %s196, 1
      %s198 = scalar_select %p195, %s196, %s197
      %p201 = pneg %p195
      %p202 = scmp.eq.s32.totalorder %s24, 1
      %p203 = por %p201, %p202
      %p204 = scmp.ne.s32.totalorder %s196, %s199
      %p205 = scmp.eq.s32.totalorder %s24, 0
      %p206 = por %p204, %p205
      %p207 = scmp.ne.s32.totalorder %s196, %s199
      %p208 = scmp.eq.s32.totalorder %s29, 1
      %p209 = por %p207, %p208
      %p210 = scmp.ne.s32.totalorder %s199, %s200
      %p211 = scmp.eq.s32.totalorder %s29, 0
      %p212 = por %p210, %p211
      %p213 = scmp.ne.s32.totalorder %s199, %s200
      %p214 = scmp.eq.s32.totalorder %s30, 1
      %p215 = por %p213, %p214
      %p217 = scmp.ne.s32.totalorder %s200, %s216
      %p218 = scmp.eq.s32.totalorder %s30, 0
      %p219 = por %p217, %p218
      %s220 = ssub.s32 %s24, %s31
      %p221 = scmp.eq.s32.totalorder %s220, 0
      %s223 = sadd.s32 %s222, 1
      %s224 = scalar_select %p221, %s222, %s223
      %p227 = pneg %p221
      %p228 = scmp.eq.s32.totalorder %s24, 1
      %p229 = por %p227, %p228
      %p230 = scmp.ne.s32.totalorder %s222, %s225
      %p231 = scmp.eq.s32.totalorder %s24, 0
      %p232 = por %p230, %p231
      %p233 = scmp.ne.s32.totalorder %s222, %s225
      %p234 = scmp.eq.s32.totalorder %s29, 1
      %p235 = por %p233, %p234
      %p236 = scmp.ne.s32.totalorder %s225, %s226
      %p237 = scmp.eq.s32.totalorder %s29, 0
      %p238 = por %p236, %p237
      %p239 = scmp.ne.s32.totalorder %s225, %s226
      %p240 = scmp.eq.s32.totalorder %s30, 1
      %p241 = por %p239, %p240
      %p243 = scmp.ne.s32.totalorder %s226, %s242
      %p244 = scmp.eq.s32.totalorder %s30, 0
      %p245 = por %p243, %p244
      %s246 = ssub.s32 %s24, %s31
      %p247 = scmp.eq.s32.totalorder %s246, 0
      %s249 = sadd.s32 %s248, 1
      %s250 = scalar_select %p247, %s248, %s249
      %p253 = pneg %p247
      %p254 = scmp.eq.s32.totalorder %s24, 1
      %p255 = por %p253, %p254
      %p256 = scmp.ne.s32.totalorder %s248, %s251
      %p257 = scmp.eq.s32.totalorder %s24, 0
      %p258 = por %p256, %p257
      %p259 = scmp.ne.s32.totalorder %s248, %s251
      %p260 = scmp.eq.s32.totalorder %s29, 1
      %p261 = por %p259, %p260
      %p262 = scmp.ne.s32.totalorder %s251, %s252
      %p263 = scmp.eq.s32.totalorder %s29, 0
      %p264 = por %p262, %p263
      %p265 = scmp.ne.s32.totalorder %s251, %s252
      %p266 = scmp.eq.s32.totalorder %s30, 1
      %p267 = por %p265, %p266
      %p269 = scmp.ne.s32.totalorder %s252, %s268
      %p270 = scmp.eq.s32.totalorder %s30, 0
      %p271 = por %p269, %p270
      %s272 = ssub.s32 %s24, %s31
      %p273 = scmp.eq.s32.totalorder %s272, 0
      %s275 = sadd.s32 %s274, 1
      %s276 = scalar_select %p273, %s274, %s275
      %p279 = pneg %p273
      %p280 = scmp.eq.s32.totalorder %s24, 1
      %p281 = por %p279, %p280
      %p282 = scmp.ne.s32.totalorder %s274, %s277
      %p283 = scmp.eq.s32.totalorder %s24, 0
      %p284 = por %p282, %p283
      %p285 = scmp.ne.s32.totalorder %s274, %s277
      %p286 = scmp.eq.s32.totalorder %s29, 1
      %p287 = por %p285, %p286
      %p288 = scmp.ne.s32.totalorder %s277, %s278
      %p289 = scmp.eq.s32.totalorder %s29, 0
      %p290 = por %p288, %p289
      %p291 = scmp.ne.s32.totalorder %s277, %s278
      %p292 = scmp.eq.s32.totalorder %s30, 1
      %p293 = por %p291, %p292
      %p295 = scmp.ne.s32.totalorder %s278, %s294
      %p296 = scmp.eq.s32.totalorder %s30, 0
      %p297 = por %p295, %p296
      %s298 = ssub.s32 %s24, %s31
      %p299 = scmp.eq.s32.totalorder %s298, 0
      %s301 = sadd.s32 %s300, 1
      %s302 = scalar_select %p299, %s300, %s301
      %p305 = pneg %p299
      %p306 = scmp.eq.s32.totalorder %s24, 1
      %p307 = por %p305, %p306
      %p308 = scmp.ne.s32.totalorder %s300, %s303
      %p309 = scmp.eq.s32.totalorder %s24, 0
      %p310 = por %p308, %p309
      %p311 = scmp.ne.s32.totalorder %s300, %s303
      %p312 = scmp.eq.s32.totalorder %s29, 1
      %p313 = por %p311, %p312
      %p314 = scmp.ne.s32.totalorder %s303, %s304
      %p315 = scmp.eq.s32.totalorder %s29, 0
      %p316 = por %p314, %p315
      %p317 = scmp.ne.s32.totalorder %s303, %s304
      %p318 = scmp.eq.s32.totalorder %s30, 1
      %p319 = por %p317, %p318
      %p321 = scmp.ne.s32.totalorder %s304, %s320
      %p322 = scmp.eq.s32.totalorder %s30, 0
      %p323 = por %p321, %p322
      %s324 = ssub.s32 %s24, %s31
      %p325 = scmp.eq.s32.totalorder %s324, 0
      %s327 = sadd.s32 %s326, 1
      %s328 = scalar_select %p325, %s326, %s327
      %p331 = pneg %p325
      %p332 = scmp.eq.s32.totalorder %s24, 1
      %p333 = por %p331, %p332
      %p334 = scmp.ne.s32.totalorder %s326, %s329
      %p335 = scmp.eq.s32.totalorder %s24, 0
      %p336 = por %p334, %p335
      %p337 = scmp.ne.s32.totalorder %s326, %s329
      %p338 = scmp.eq.s32.totalorder %s29, 1
      %p339 = por %p337, %p338
      %p340 = scmp.ne.s32.totalorder %s329, %s330
      %p341 = scmp.eq.s32.totalorder %s29, 0
      %p342 = por %p340, %p341
      %p343 = scmp.ne.s32.totalorder %s329, %s330
      %p344 = scmp.eq.s32.totalorder %s30, 1
      %p345 = por %p343, %p344
      %p347 = scmp.ne.s32.totalorder %s330, %s346
      %p348 = scmp.eq.s32.totalorder %s30, 0
      %p349 = por %p347, %p348
      %s350 = ssub.s32 %s24, %s31
      %p351 = scmp.eq.s32.totalorder %s350, 0
      %s353 = sadd.s32 %s352, 1
      %s354 = scalar_select %p351, %s352, %s353
      %p357 = pneg %p351
      %p358 = scmp.eq.s32.totalorder %s24, 1
      %p359 = por %p357, %p358
      %p360 = scmp.ne.s32.totalorder %s352, %s355
      %p361 = scmp.eq.s32.totalorder %s24, 0
      %p362 = por %p360, %p361
      %p363 = scmp.ne.s32.totalorder %s352, %s355
      %p364 = scmp.eq.s32.totalorder %s29, 1
      %p365 = por %p363, %p364
      %p366 = scmp.ne.s32.totalorder %s355, %s356
      %p367 = scmp.eq.s32.totalorder %s29, 0
      %p368 = por %p366, %p367
      %p369 = scmp.ne.s32.totalorder %s355, %s356
      %p370 = scmp.eq.s32.totalorder %s30, 1
      %p371 = por %p369, %p370
      %p373 = scmp.ne.s32.totalorder %s356, %s372
      %p374 = scmp.eq.s32.totalorder %s30, 0
      %p375 = por %p373, %p374
      %s376 = ssub.s32 %s24, %s31
      %p377 = scmp.eq.s32.totalorder %s376, 0
      %s379 = sadd.s32 %s378, 1
      %s380 = scalar_select %p377, %s378, %s379
      %p383 = pneg %p377
      %p384 = scmp.eq.s32.totalorder %s24, 1
      %p385 = por %p383, %p384
      %p386 = scmp.ne.s32.totalorder %s378, %s381
      %p387 = scmp.eq.s32.totalorder %s24, 0
      %p388 = por %p386, %p387
      %p389 = scmp.ne.s32.totalorder %s378, %s381
      %p390 = scmp.eq.s32.totalorder %s29, 1
      %p391 = por %p389, %p390
      %p392 = scmp.ne.s32.totalorder %s381, %s382
      %p393 = scmp.eq.s32.totalorder %s29, 0
      %p394 = por %p392, %p393
      %p395 = scmp.ne.s32.totalorder %s381, %s382
      %p396 = scmp.eq.s32.totalorder %s30, 1
      %p397 = por %p395, %p396
      %p399 = scmp.ne.s32.totalorder %s382, %s398
      %p400 = scmp.eq.s32.totalorder %s30, 0
      %p401 = por %p399, %p400
      %s402 = ssub.s32 %s24, %s31
      %p403 = scmp.eq.s32.totalorder %s402, 0
      %s405 = sadd.s32 %s404, 1
      %s406 = scalar_select %p403, %s404, %s405
      %p409 = pneg %p403
      %p410 = scmp.eq.s32.totalorder %s24, 1
      %p411 = por %p409, %p410
      %p412 = scmp.ne.s32.totalorder %s404, %s407
      %p413 = scmp.eq.s32.totalorder %s24, 0
      %p414 = por %p412, %p413
      %p415 = scmp.ne.s32.totalorder %s404, %s407
      %p416 = scmp.eq.s32.totalorder %s29, 1
      %p417 = por %p415, %p416
      %p418 = scmp.ne.s32.totalorder %s407, %s408
      %p419 = scmp.eq.s32.totalorder %s29, 0
      %p420 = por %p418, %p419
      %p421 = scmp.ne.s32.totalorder %s407, %s408
      %p422 = scmp.eq.s32.totalorder %s30, 1
      %p423 = por %p421, %p422
      %p425 = scmp.ne.s32.totalorder %s408, %s424
      %p426 = scmp.eq.s32.totalorder %s30, 0
      %p427 = por %p425, %p426
      %s429 = sadd.s32 %s428, 1
      %p432 = scmp.eq.s32.totalorder %s24, 1
      %p433 = scmp.ne.s32.totalorder %s428, %s430
      %p434 = scmp.eq.s32.totalorder %s24, 0
      %p435 = por %p433, %p434
      %p436 = scmp.ne.s32.totalorder %s428, %s430
      %p437 = scmp.eq.s32.totalorder %s29, 1
      %p438 = por %p436, %p437
      %p439 = scmp.ne.s32.totalorder %s430, %s431
      %p440 = scmp.eq.s32.totalorder %s29, 0
      %p441 = por %p439, %p440
      %p442 = scmp.ne.s32.totalorder %s430, %s431
      %p443 = scmp.eq.s32.totalorder %s30, 1
      %p444 = por %p442, %p443
      %p446 = scmp.ne.s32.totalorder %s431, %s445
      %p447 = scmp.eq.s32.totalorder %s30, 0
      %p448 = por %p446, %p447
      %p449 = scmp.le.s32.totalorder 1, %s24
      %p450 = scmp.lt.s32.totalorder %s24, 3
      %p451 = pnand %p449, %p450
      %p452 = pneg %p451
      // Predicated region
      $region9: #{dpr_context_encoder_forward.1} parent=5 // pred_check
        _
      $region10: #{dpr_context_encoder_forward.1} parent=5 // pred_check_branch
        %454 = sbr.rel (%p451) target = $region12
      $region11: #{dpr_context_encoder_forward.1} parent=5 // pred_region
        %s455 = ssub.s32 %s24, 1
        // Predicated region
        $region13: #{dpr_context_encoder_forward.1} parent=11 // pred_check
          %p456 = pneg %p45
        $region14: #{dpr_context_encoder_forward.1} parent=11 // pred_check_branch
          %458 = sbr.rel (%p456) target = $region16
        $region15: #{dpr_context_encoder_forward.1} parent=11 // pred_region
          _
        $region16: #{dpr_context_encoder_forward.1} parent=11 // pred_fallthru
          _
        // Predicated region
        $region17: #{dpr_context_encoder_forward.1} parent=11 // pred_check
          %p459 = pneg %p66
        $region18: #{dpr_context_encoder_forward.1} parent=11 // pred_check_branch
          %461 = sbr.rel (%p459) target = $region20
        $region19: #{dpr_context_encoder_forward.1} parent=11 // pred_region
          _
        $region20: #{dpr_context_encoder_forward.1} parent=11 // pred_fallthru
          _
        // Predicated region
        $region21: #{dpr_context_encoder_forward.1} parent=11 // pred_check
          %p462 = pneg %p87
        $region22: #{dpr_context_encoder_forward.1} parent=11 // pred_check_branch
          %464 = sbr.rel (%p462) target = $region24
        $region23: #{dpr_context_encoder_forward.1} parent=11 // pred_region
          %s466 = ssub.s32 16, 16
          %467 = vsyncadd [#allocation4], %s466
          %s469 = sshll.u32 [#allocation3], 4
          %s470 = int_to_ptr.vmem [resolvable:$true] %s469
          %472 = dma.hbm_to_vmem [thread:$0]  %s2, 16, %s470, [#allocation4]
        $region24: #{dpr_context_encoder_forward.1} parent=11 // pred_fallthru
          _
        // Predicated region
        $region25: #{dpr_context_encoder_forward.1} parent=11 // pred_check
          %p473 = pneg %p108
        $region26: #{dpr_context_encoder_forward.1} parent=11 // pred_check_branch
          %475 = sbr.rel (%p473) target = $region28
        $region27: #{dpr_context_encoder_forward.1} parent=11 // pred_region
          %s477 = ssub.s32 16, 16
          %478 = vsyncadd [#allocation6], %s477
          %s480 = sshll.u32 [#allocation5], 4
          %s481 = int_to_ptr.vmem [resolvable:$true] %s480
          %483 = dma.hbm_to_vmem [thread:$0]  %s3, 16, %s481, [#allocation6]
        $region28: #{dpr_context_encoder_forward.1} parent=11 // pred_fallthru
          _
      $region12: #{dpr_context_encoder_forward.1} parent=5 // pred_fallthru
        _
      %p484 = scmp.lt.s32.totalorder %s24, 2
      // Predicated region
      $region29: #{dpr_context_encoder_forward.1} parent=5 // pred_check
        %p485 = pneg %p484
      $region30: #{dpr_context_encoder_forward.1} parent=5 // pred_check_branch
        %487 = sbr.rel (%p485) target = $region32
      $region31: #{dpr_context_encoder_forward.1} parent=5 // pred_region
        // Predicated region
        $region33: #{dpr_context_encoder_forward.1} parent=31 // pred_check
          %p488 = pneg %p128
        $region34: #{dpr_context_encoder_forward.1} parent=31 // pred_check_branch
          %490 = sbr.rel (%p488) target = $region36
        $region35: #{dpr_context_encoder_forward.1} parent=31 // pred_region
          %p491 = scmp.lt.s32.totalorder %s24, 1
          %s492 = scalar_select %p491, %s24, 1
          %s493 = smul.addr %s492, 48
          %s494 = smul.addr %s493, 4
          %s495 = scalar_lea.vmem %s4, %s494
        $region36: #{dpr_context_encoder_forward.1} parent=31 // pred_fallthru
          _
        // Predicated region
        $region37: #{dpr_context_encoder_forward.1} parent=31 // pred_check
          %p496 = pneg %p154
        $region38: #{dpr_context_encoder_forward.1} parent=31 // pred_check_branch
          %498 = sbr.rel (%p496) target = $region40
        $region39: #{dpr_context_encoder_forward.1} parent=31 // pred_region
          %s499 = sand.u32 %s24, 1
          %s500 = scalar_lea.sflag [#allocation4], %s499
          %s501 = sand.u32 %s144, 1
          %s502 = smul.addr %s501, 3
          %s503 = scalar_lea.vmem [#allocation7], %s502
          %s505 = ssub.s32 48, 48
          %506 = vsyncadd %s500, %s505
          %s507 = smul.addr %s24, 3
          %s508 = smul.addr %s507, 16
          %s509 = scalar_lea.hbm %s5, %s508
          %s511 = sshll.u32 %s503, 4
          %s512 = int_to_ptr.vmem [resolvable:$true] %s511
          %514 = dma.hbm_to_vmem [thread:$0]  %s509, 48, %s512, %s500
        $region40: #{dpr_context_encoder_forward.1} parent=31 // pred_fallthru
          _
        // Predicated region
        $region41: #{dpr_context_encoder_forward.1} parent=31 // pred_check
          %p515 = pneg %p180
        $region42: #{dpr_context_encoder_forward.1} parent=31 // pred_check_branch
          %517 = sbr.rel (%p515) target = $region44
        $region43: #{dpr_context_encoder_forward.1} parent=31 // pred_region
          %s518 = sand.u32 %s24, 1
          %s519 = scalar_lea.sflag [#allocation4], %s518
          %s520 = sand.u32 %s170, 1
          %s521 = smul.addr %s520, 64
          %s522 = scalar_lea.vmem [#allocation8], %s521
          %s524 = ssub.s32 1024, 1024
          %525 = vsyncadd %s519, %s524
          %s526 = smul.addr %s24, 16
          %s527 = smul.addr %s526, 64
          %s528 = scalar_lea.hbm %s6, %s527
          %s529 = sshll.u32 %s522, 4
          %s530 = int_to_ptr.vmem [resolvable:$true] %s529
          %535 = dma.hbm_to_vmem [thread:$0]  %s528, 1024, %s530, %s519, 64, 64, 4
        $region44: #{dpr_context_encoder_forward.1} parent=31 // pred_fallthru
          _
        // Predicated region
        $region45: #{dpr_context_encoder_forward.1} parent=31 // pred_check
          %p536 = pneg %p206
        $region46: #{dpr_context_encoder_forward.1} parent=31 // pred_check_branch
          %538 = sbr.rel (%p536) target = $region48
        $region47: #{dpr_context_encoder_forward.1} parent=31 // pred_region
          %s539 = sand.u32 %s24, 1
          %s540 = scalar_lea.sflag [#allocation4], %s539
          %s541 = sand.u32 %s196, 1
          %s542 = scalar_lea.vmem [#allocation9], %s541
          %s544 = ssub.s32 16, 16
          %545 = vsyncadd %s540, %s544
          %s546 = smul.addr %s24, 16
          %s547 = scalar_lea.hbm %s7, %s546
          %s549 = sshll.u32 %s542, 4
          %s550 = int_to_ptr.vmem [resolvable:$true] %s549
          %552 = dma.hbm_to_vmem [thread:$0]  %s547, 16, %s550, %s540
        $region48: #{dpr_context_encoder_forward.1} parent=31 // pred_fallthru
          _
        // Predicated region
        $region49: #{dpr_context_encoder_forward.1} parent=31 // pred_check
          %p553 = pneg %p232
        $region50: #{dpr_context_encoder_forward.1} parent=31 // pred_check_branch
          %555 = sbr.rel (%p553) target = $region52
        $region51: #{dpr_context_encoder_forward.1} parent=31 // pred_region
          %s556 = sand.u32 %s24, 1
          %s557 = scalar_lea.sflag [#allocation4], %s556
          %s558 = sand.u32 %s222, 1
          %s559 = scalar_lea.vmem [#allocation10], %s558
          %s561 = ssub.s32 16, 16
          %562 = vsyncadd %s557, %s561
          %s563 = smul.addr %s24, 16
          %s564 = scalar_lea.hbm %s8, %s563
          %s566 = sshll.u32 %s559, 4
          %s567 = int_to_ptr.vmem [resolvable:$true] %s566
          %569 = dma.hbm_to_vmem [thread:$0]  %s564, 16, %s567, %s557
        $region52: #{dpr_context_encoder_forward.1} parent=31 // pred_fallthru
          _
        // Predicated region
        $region53: #{dpr_context_encoder_forward.1} parent=31 // pred_check
          %p570 = pneg %p258
        $region54: #{dpr_context_encoder_forward.1} parent=31 // pred_check_branch
          %572 = sbr.rel (%p570) target = $region56
        $region55: #{dpr_context_encoder_forward.1} parent=31 // pred_region
          %s573 = sand.u32 %s24, 1
          %s574 = scalar_lea.sflag [#allocation4], %s573
          %s575 = sand.u32 %s248, 1
          %s576 = scalar_lea.vmem [#allocation11], %s575
          %s578 = ssub.s32 16, 16
          %579 = vsyncadd %s574, %s578
          %s580 = smul.addr %s24, 16
          %s581 = scalar_lea.hbm %s9, %s580
          %s583 = sshll.u32 %s576, 4
          %s584 = int_to_ptr.vmem [resolvable:$true] %s583
          %586 = dma.hbm_to_vmem [thread:$0]  %s581, 16, %s584, %s574
        $region56: #{dpr_context_encoder_forward.1} parent=31 // pred_fallthru
          _
        // Predicated region
        $region57: #{dpr_context_encoder_forward.1} parent=31 // pred_check
          %p587 = pneg %p284
        $region58: #{dpr_context_encoder_forward.1} parent=31 // pred_check_branch
          %589 = sbr.rel (%p587) target = $region60
        $region59: #{dpr_context_encoder_forward.1} parent=31 // pred_region
          %s590 = sand.u32 %s24, 1
          %s591 = scalar_lea.sflag [#allocation4], %s590
          %s592 = sand.u32 %s274, 1
          %s593 = smul.addr %s592, 128
          %s594 = scalar_lea.vmem [#allocation12], %s593
          %s596 = ssub.s32 2048, 2048
          %597 = vsyncadd %s591, %s596
          %s598 = smul.addr %s24, 32
          %s599 = smul.addr %s598, 64
          %s600 = scalar_lea.hbm %s10, %s599
          %s601 = sshll.u32 %s594, 4
          %s602 = int_to_ptr.vmem [resolvable:$true] %s601
          %607 = dma.hbm_to_vmem [thread:$0]  %s600, 2048, %s602, %s591, 128, 128, 8
        $region60: #{dpr_context_encoder_forward.1} parent=31 // pred_fallthru
          _
        // Predicated region
        $region61: #{dpr_context_encoder_forward.1} parent=31 // pred_check
          %p608 = pneg %p310
        $region62: #{dpr_context_encoder_forward.1} parent=31 // pred_check_branch
          %610 = sbr.rel (%p608) target = $region64
        $region63: #{dpr_context_encoder_forward.1} parent=31 // pred_region
          %p611 = scmp.lt.s32.totalorder %s24, 1
          %s612 = scalar_select %p611, %s24, 1
          %s613 = smul.addr %s612, 2
          %s614 = scalar_lea.vmem %s11, %s613
        $region64: #{dpr_context_encoder_forward.1} parent=31 // pred_fallthru
          _
        // Predicated region
        $region65: #{dpr_context_encoder_forward.1} parent=31 // pred_check
          %p615 = pneg %p336
        $region66: #{dpr_context_encoder_forward.1} parent=31 // pred_check_branch
          %617 = sbr.rel (%p615) target = $region68
        $region67: #{dpr_context_encoder_forward.1} parent=31 // pred_region
          %s618 = sand.u32 %s24, 1
          %s619 = scalar_lea.sflag [#allocation4], %s618
          %s620 = sand.u32 %s326, 1
          %s621 = smul.addr %s620, 128
          %s622 = scalar_lea.vmem [#allocation13], %s621
          %s624 = ssub.s32 2048, 2048
          %625 = vsyncadd %s619, %s624
          %s626 = smul.addr %s24, 32
          %s627 = smul.addr %s626, 64
          %s628 = scalar_lea.hbm %s12, %s627
          %s629 = sshll.u32 %s622, 4
          %s630 = int_to_ptr.vmem [resolvable:$true] %s629
          %635 = dma.hbm_to_vmem [thread:$0]  %s628, 2048, %s630, %s619, 64, 64, 4
        $region68: #{dpr_context_encoder_forward.1} parent=31 // pred_fallthru
          _
        // Predicated region
        $region69: #{dpr_context_encoder_forward.1} parent=31 // pred_check
          %p636 = pneg %p362
        $region70: #{dpr_context_encoder_forward.1} parent=31 // pred_check_branch
          %638 = sbr.rel (%p636) target = $region72
        $region71: #{dpr_context_encoder_forward.1} parent=31 // pred_region
          %s639 = sand.u32 %s24, 1
          %s640 = scalar_lea.sflag [#allocation4], %s639
          %s641 = sand.u32 %s352, 1
          %s642 = scalar_lea.vmem [#allocation14], %s641
          %s644 = ssub.s32 16, 16
          %645 = vsyncadd %s640, %s644
          %s646 = smul.addr %s24, 16
          %s647 = scalar_lea.hbm %s13, %s646
          %s649 = sshll.u32 %s642, 4
          %s650 = int_to_ptr.vmem [resolvable:$true] %s649
          %652 = dma.hbm_to_vmem [thread:$0]  %s647, 16, %s650, %s640
        $region72: #{dpr_context_encoder_forward.1} parent=31 // pred_fallthru
          _
        // Predicated region
        $region73: #{dpr_context_encoder_forward.1} parent=31 // pred_check
          %p653 = pneg %p388
        $region74: #{dpr_context_encoder_forward.1} parent=31 // pred_check_branch
          %655 = sbr.rel (%p653) target = $region76
        $region75: #{dpr_context_encoder_forward.1} parent=31 // pred_region
          %s656 = sand.u32 %s24, 1
          %s657 = scalar_lea.sflag [#allocation4], %s656
          %s658 = sand.u32 %s378, 1
          %s659 = scalar_lea.vmem [#allocation15], %s658
          %s661 = ssub.s32 16, 16
          %662 = vsyncadd %s657, %s661
          %s663 = smul.addr %s24, 16
          %s664 = scalar_lea.hbm %s14, %s663
          %s666 = sshll.u32 %s659, 4
          %s667 = int_to_ptr.vmem [resolvable:$true] %s666
          %669 = dma.hbm_to_vmem [thread:$0]  %s664, 16, %s667, %s657
        $region76: #{dpr_context_encoder_forward.1} parent=31 // pred_fallthru
          _
        // Predicated region
        $region77: #{dpr_context_encoder_forward.1} parent=31 // pred_check
          %p670 = pneg %p414
        $region78: #{dpr_context_encoder_forward.1} parent=31 // pred_check_branch
          %672 = sbr.rel (%p670) target = $region80
        $region79: #{dpr_context_encoder_forward.1} parent=31 // pred_region
          %s673 = sand.u32 %s24, 1
          %s674 = scalar_lea.sflag [#allocation4], %s673
          %s675 = sand.u32 %s404, 1
          %s676 = scalar_lea.vmem [#allocation16], %s675
          %s678 = ssub.s32 16, 16
          %679 = vsyncadd %s674, %s678
          %s680 = smul.addr %s24, 16
          %s681 = scalar_lea.hbm %s15, %s680
          %s683 = sshll.u32 %s676, 4
          %s684 = int_to_ptr.vmem [resolvable:$true] %s683
          %686 = dma.hbm_to_vmem [thread:$0]  %s681, 16, %s684, %s674
        $region80: #{dpr_context_encoder_forward.1} parent=31 // pred_fallthru
          _
      $region32: #{dpr_context_encoder_forward.1} parent=5 // pred_fallthru
        _
      %p687 = scmp.le.s32.totalorder 1, %s24
      %p688 = scmp.lt.s32.totalorder %s24, 3
      %p689 = pnand %p687, %p688
      %p690 = pneg %p689
      // Predicated region
      $region81: #{dpr_context_encoder_forward.1} parent=5 // pred_check
        _
      $region82: #{dpr_context_encoder_forward.1} parent=5 // pred_check_branch
        %692 = sbr.rel (%p689) target = $region84
      $region83: #{dpr_context_encoder_forward.1} parent=5 // pred_region
        %s693 = ssub.s32 %s24, 1
        // Predicated region
        $region85: #{dpr_context_encoder_forward.1} parent=83 // pred_check
          %p694 = pneg %p87
        $region86: #{dpr_context_encoder_forward.1} parent=83 // pred_check_branch
          %696 = sbr.rel (%p694) target = $region88
        $region87: #{dpr_context_encoder_forward.1} parent=83 // pred_region
          %697 = dma.done [#allocation4], 16
        $region88: #{dpr_context_encoder_forward.1} parent=83 // pred_fallthru
          _
        // Predicated region
        $region89: #{dpr_context_encoder_forward.1} parent=83 // pred_check
          %p698 = pneg %p108
        $region90: #{dpr_context_encoder_forward.1} parent=83 // pred_check_branch
          %700 = sbr.rel (%p698) target = $region92
        $region91: #{dpr_context_encoder_forward.1} parent=83 // pred_region
          %701 = dma.done [#allocation6], 16
        $region92: #{dpr_context_encoder_forward.1} parent=83 // pred_fallthru
          _
        %s702 = sand.u32 %s29, 1
        %s703 = scalar_lea.sflag [#allocation4], %s702
        %s704 = sand.u32 %s147, 1
        %s705 = smul.addr %s704, 3
        %s706 = scalar_lea.vmem [#allocation7], %s705
        // Predicated region
        $region93: #{dpr_context_encoder_forward.1} parent=83 // pred_check
          %p707 = pneg %p160
        $region94: #{dpr_context_encoder_forward.1} parent=83 // pred_check_branch
          %709 = sbr.rel (%p707) target = $region96
        $region95: #{dpr_context_encoder_forward.1} parent=83 // pred_region
          %710 = dma.done %s703, 48
        $region96: #{dpr_context_encoder_forward.1} parent=83 // pred_fallthru
          _
        %s711 = sand.u32 %s29, 1
        %s712 = scalar_lea.sflag [#allocation4], %s711
        %s713 = sand.u32 %s173, 1
        %s714 = smul.addr %s713, 64
        %s715 = scalar_lea.vmem [#allocation8], %s714
        // Predicated region
        $region97: #{dpr_context_encoder_forward.1} parent=83 // pred_check
          %p716 = pneg %p186
        $region98: #{dpr_context_encoder_forward.1} parent=83 // pred_check_branch
          %718 = sbr.rel (%p716) target = $region100
        $region99: #{dpr_context_encoder_forward.1} parent=83 // pred_region
          %719 = dma.done %s712, 1024
        $region100: #{dpr_context_encoder_forward.1} parent=83 // pred_fallthru
          _
        %s720 = sand.u32 %s29, 1
        %s721 = scalar_lea.sflag [#allocation4], %s720
        %s722 = sand.u32 %s199, 1
        %s723 = scalar_lea.vmem [#allocation9], %s722
        // Predicated region
        $region101: #{dpr_context_encoder_forward.1} parent=83 // pred_check
          %p724 = pneg %p212
        $region102: #{dpr_context_encoder_forward.1} parent=83 // pred_check_branch
          %726 = sbr.rel (%p724) target = $region104
        $region103: #{dpr_context_encoder_forward.1} parent=83 // pred_region
          %727 = dma.done %s721, 16
        $region104: #{dpr_context_encoder_forward.1} parent=83 // pred_fallthru
          _
        %s728 = sand.u32 %s29, 1
        %s729 = scalar_lea.sflag [#allocation4], %s728
        %s730 = sand.u32 %s225, 1
        %s731 = scalar_lea.vmem [#allocation10], %s730
        // Predicated region
        $region105: #{dpr_context_encoder_forward.1} parent=83 // pred_check
          %p732 = pneg %p238
        $region106: #{dpr_context_encoder_forward.1} parent=83 // pred_check_branch
          %734 = sbr.rel (%p732) target = $region108
        $region107: #{dpr_context_encoder_forward.1} parent=83 // pred_region
          %735 = dma.done %s729, 16
        $region108: #{dpr_context_encoder_forward.1} parent=83 // pred_fallthru
          _
        %s736 = sand.u32 %s29, 1
        %s737 = scalar_lea.sflag [#allocation4], %s736
        %s738 = sand.u32 %s251, 1
        %s739 = scalar_lea.vmem [#allocation11], %s738
        // Predicated region
        $region109: #{dpr_context_encoder_forward.1} parent=83 // pred_check
          %p740 = pneg %p264
        $region110: #{dpr_context_encoder_forward.1} parent=83 // pred_check_branch
          %742 = sbr.rel (%p740) target = $region112
        $region111: #{dpr_context_encoder_forward.1} parent=83 // pred_region
          %743 = dma.done %s737, 16
        $region112: #{dpr_context_encoder_forward.1} parent=83 // pred_fallthru
          _
        %s744 = sand.u32 %s29, 1
        %s745 = scalar_lea.sflag [#allocation4], %s744
        %s746 = sand.u32 %s277, 1
        %s747 = smul.addr %s746, 128
        %s748 = scalar_lea.vmem [#allocation12], %s747
        // Predicated region
        $region113: #{dpr_context_encoder_forward.1} parent=83 // pred_check
          %p749 = pneg %p290
        $region114: #{dpr_context_encoder_forward.1} parent=83 // pred_check_branch
          %751 = sbr.rel (%p749) target = $region116
        $region115: #{dpr_context_encoder_forward.1} parent=83 // pred_region
          %752 = dma.done %s745, 2048
        $region116: #{dpr_context_encoder_forward.1} parent=83 // pred_fallthru
          _
        %s753 = sand.u32 %s29, 1
        %s754 = scalar_lea.sflag [#allocation4], %s753
        %s755 = sand.u32 %s329, 1
        %s756 = smul.addr %s755, 128
        %s757 = scalar_lea.vmem [#allocation13], %s756
        // Predicated region
        $region117: #{dpr_context_encoder_forward.1} parent=83 // pred_check
          %p758 = pneg %p342
        $region118: #{dpr_context_encoder_forward.1} parent=83 // pred_check_branch
          %760 = sbr.rel (%p758) target = $region120
        $region119: #{dpr_context_encoder_forward.1} parent=83 // pred_region
          %761 = dma.done %s754, 2048
        $region120: #{dpr_context_encoder_forward.1} parent=83 // pred_fallthru
          _
        %s762 = sand.u32 %s29, 1
        %s763 = scalar_lea.sflag [#allocation4], %s762
        %s764 = sand.u32 %s355, 1
        %s765 = scalar_lea.vmem [#allocation14], %s764
        // Predicated region
        $region121: #{dpr_context_encoder_forward.1} parent=83 // pred_check
          %p766 = pneg %p368
        $region122: #{dpr_context_encoder_forward.1} parent=83 // pred_check_branch
          %768 = sbr.rel (%p766) target = $region124
        $region123: #{dpr_context_encoder_forward.1} parent=83 // pred_region
          %769 = dma.done %s763, 16
        $region124: #{dpr_context_encoder_forward.1} parent=83 // pred_fallthru
          _
        %s770 = sand.u32 %s29, 1
        %s771 = scalar_lea.sflag [#allocation4], %s770
        %s772 = sand.u32 %s381, 1
        %s773 = scalar_lea.vmem [#allocation15], %s772
        // Predicated region
        $region125: #{dpr_context_encoder_forward.1} parent=83 // pred_check
          %p774 = pneg %p394
        $region126: #{dpr_context_encoder_forward.1} parent=83 // pred_check_branch
          %776 = sbr.rel (%p774) target = $region128
        $region127: #{dpr_context_encoder_forward.1} parent=83 // pred_region
          %777 = dma.done %s771, 16
        $region128: #{dpr_context_encoder_forward.1} parent=83 // pred_fallthru
          _
        %s778 = sand.u32 %s29, 1
        %s779 = scalar_lea.sflag [#allocation4], %s778
        %s780 = sand.u32 %s407, 1
        %s781 = scalar_lea.vmem [#allocation16], %s780
        // Predicated region
        $region129: #{dpr_context_encoder_forward.1} parent=83 // pred_check
          %p782 = pneg %p420
        $region130: #{dpr_context_encoder_forward.1} parent=83 // pred_check_branch
          %784 = sbr.rel (%p782) target = $region132
        $region131: #{dpr_context_encoder_forward.1} parent=83 // pred_region
          %785 = dma.done %s779, 16
        $region132: #{dpr_context_encoder_forward.1} parent=83 // pred_fallthru
          _
        %p786 = pneg %p45
        %p787 = pneg %p42
        %p788 = pneg %p66
        %p789 = pneg %p63
        %p790 = pneg %p87
        %p791 = pneg %p84
        %p792 = pneg %p108
        %p793 = pneg %p105
        %p794 = scmp.lt.s32.totalorder %s29, 1
        %s795 = scalar_select %p794, %s29, 1
        %s796 = smul.addr %s795, 48
        %s797 = smul.addr %s796, 4
        %s798 = scalar_lea.vmem %s4, %s797
        %p799 = pneg %p134
        %p800 = pneg %p131
        %s801 = sand.u32 %s29, 1
        %s802 = scalar_lea.sflag [#allocation4], %s801
        %s803 = sand.u32 %s147, 1
        %s804 = smul.addr %s803, 3
        %s805 = scalar_lea.vmem [#allocation7], %s804
        %p806 = pneg %p160
        %p807 = pneg %p157
        %s808 = sand.u32 %s29, 1
        %s809 = scalar_lea.sflag [#allocation4], %s808
        %s810 = sand.u32 %s173, 1
        %s811 = smul.addr %s810, 64
        %s812 = scalar_lea.vmem [#allocation8], %s811
        %p813 = pneg %p186
        %p814 = pneg %p183
        %s815 = sand.u32 %s29, 1
        %s816 = scalar_lea.sflag [#allocation4], %s815
        %s817 = sand.u32 %s199, 1
        %s818 = scalar_lea.vmem [#allocation9], %s817
        %p819 = pneg %p212
        %p820 = pneg %p209
        %s821 = sand.u32 %s29, 1
        %s822 = scalar_lea.sflag [#allocation4], %s821
        %s823 = sand.u32 %s225, 1
        %s824 = scalar_lea.vmem [#allocation10], %s823
        %p825 = pneg %p238
        %p826 = pneg %p235
        %s827 = sand.u32 %s29, 1
        %s828 = scalar_lea.sflag [#allocation4], %s827
        %s829 = sand.u32 %s251, 1
        %s830 = scalar_lea.vmem [#allocation11], %s829
        %p831 = pneg %p264
        %p832 = pneg %p261
        %s833 = sand.u32 %s29, 1
        %s834 = scalar_lea.sflag [#allocation4], %s833
        %s835 = sand.u32 %s277, 1
        %s836 = smul.addr %s835, 128
        %s837 = scalar_lea.vmem [#allocation12], %s836
        %p838 = pneg %p290
        %p839 = pneg %p287
        %p840 = scmp.lt.s32.totalorder %s29, 1
        %s841 = scalar_select %p840, %s29, 1
        %s842 = smul.addr %s841, 2
        %s843 = scalar_lea.vmem %s11, %s842
        %p844 = pneg %p316
        %p845 = pneg %p313
        %s846 = sand.u32 %s29, 1
        %s847 = scalar_lea.sflag [#allocation4], %s846
        %s848 = sand.u32 %s329, 1
        %s849 = smul.addr %s848, 128
        %s850 = scalar_lea.vmem [#allocation13], %s849
        %p851 = pneg %p342
        %p852 = pneg %p339
        %s853 = sand.u32 %s29, 1
        %s854 = scalar_lea.sflag [#allocation4], %s853
        %s855 = sand.u32 %s355, 1
        %s856 = scalar_lea.vmem [#allocation14], %s855
        %p857 = pneg %p368
        %p858 = pneg %p365
        %s859 = sand.u32 %s29, 1
        %s860 = scalar_lea.sflag [#allocation4], %s859
        %s861 = sand.u32 %s381, 1
        %s862 = scalar_lea.vmem [#allocation15], %s861
        %p863 = pneg %p394
        %p864 = pneg %p391
        %s865 = sand.u32 %s29, 1
        %s866 = scalar_lea.sflag [#allocation4], %s865
        %s867 = sand.u32 %s407, 1
        %s868 = scalar_lea.vmem [#allocation16], %s867
        %p869 = pneg %p420
        %p870 = pneg %p417
        %p871 = pneg %p441
        %p872 = pneg %p438
        %p873 = scmp.lt.s32.totalorder %s29, 1
        %s874 = scalar_select %p873, %s29, 1
        %s875 = smul.addr %s874, 48
        %s876 = smul.addr %s875, 4
        %s877 = scalar_lea.vmem %s4, %s876
        %p878 = scmp.lt.s32.totalorder %s29, 1
        %s879 = scalar_select %p878, %s29, 1
        %s880 = smul.addr %s879, 2
        %s881 = scalar_lea.vmem %s11, %s880
        %p883 = scmp.eq.s32.totalorder %s29, 0
        // Predicated region
        $region133: #{dpr_context_encoder_forward.1} parent=83 // pred_check
          %p884 = pneg %p883
        $region134: #{dpr_context_encoder_forward.1} parent=83 // pred_check_branch
          %886 = sbr.rel (%p884) target = $region136
        $region135: #{dpr_context_encoder_forward.1} parent=83 // pred_region
          %v887 = vld [vmem:[%s0] sm:$0xff]
          %v888 = vld [vmem:[%s0 + $0x8] sm:$0xff]
          %v889 = vld [vmem:[#allocation3] sm:$0x1]
          %v890 = vld [vmem:[#allocation5] sm:$0x1]
          %891 = vadd.xlane.f32.xlu0 %v887
          %v892 = vpop.xlane.xlu0 %891
          %893 = vadd.xlane.f32.xlu0 %v888
          %v894 = vpop.xlane.xlu0 %893
          %v895 = vrcp.pop 128.0
          %v896 = vmul.f32 %v892, %v895
          %v897 = vmul.f32 %v894, %v895
          %v898 = vsub.f32 %v887, %v896
          %v899 = vsub.f32 %v888, %v897
          %v900 = vmul.f32 %v898, %v898
          %v901 = vmul.f32 %v899, %v899
          %902 = vadd.xlane.f32.xlu0 %v900
          %v903 = vpop.xlane.xlu0 %902
          %904 = vadd.xlane.f32.xlu0 %v901
          %v905 = vpop.xlane.xlu0 %904
          %v906 = vmul.f32 %v903, %v895
          %v907 = vmul.f32 %v905, %v895
          %v908 = vadd.f32 %v906, 1e-12
          %v909 = vadd.f32 %v907, 1e-12
          %v910 = vrsqrt.pop %v908
          %v911 = vrsqrt.pop %v909
          %v912 = vmul.f32 %v898, %v910
          %v913 = vmul.f32 %v899, %v911
          %v915 = vlaneseq
          %v916 = vshrl.u32 %v915, 7
          %v917 = vsub.s32 0, %v916
          %v918 = vrot.slane %v889, %v917
          %v920 = vmul.f32 %v912, %v918
          %v921 = vmul.f32 %v913, %v918
          %v923 = vlaneseq
          %v924 = vshrl.u32 %v923, 7
          %v925 = vsub.s32 0, %v924
          %v926 = vrot.slane %v890, %v925
          %v928 = vadd.f32 %v920, %v926
          %v929 = vadd.f32 %v921, %v926
          %930 = vst [vmem:[#allocation2] sm:$0xff] %v928
          %931 = vst [vmem:[#allocation2 + $0x8] sm:$0xff] %v929
        $region136: #{dpr_context_encoder_forward.1} parent=83 // pred_fallthru
          _
        %v932 = vld [vmem:[#allocation2] sm:$0xff]
        %v933 = vld [vmem:[#allocation2 + $0x8] sm:$0xff]
        %v934 = vpack.c.bf16 %v933, %v932
        %v935 = vld [vmem:[%s877] sm:$0xff]
        %v936 = vld [vmem:[%s877 + $0x8] sm:$0xf]
        %v937 = vld [vmem:[%s877 + $0xc] sm:$0xff]
        %v938 = vld [vmem:[%s877 + $0x14] sm:$0xf]
        %v939 = vld [vmem:[%s877 + $0x18] sm:$0xff]
        %v940 = vld [vmem:[%s877 + $0x20] sm:$0xf]
        %v941 = vld [vmem:[%s877 + $0x24] sm:$0xff]
        %v942 = vld [vmem:[%s877 + $0x2c] sm:$0xf]
        %v943 = vld [vmem:[%s877 + $0x30] sm:$0xff]
        %v944 = vld [vmem:[%s877 + $0x38] sm:$0xf]
        %v945 = vld [vmem:[%s877 + $0x3c] sm:$0xff]
        %v946 = vld [vmem:[%s877 + $0x44] sm:$0xf]
        %v947 = vld [vmem:[%s877 + $0x48] sm:$0xff]
        %v948 = vld [vmem:[%s877 + $0x50] sm:$0xf]
        %v949 = vld [vmem:[%s877 + $0x54] sm:$0xff]
        %v950 = vld [vmem:[%s877 + $0x5c] sm:$0xf]
        %v951 = vld [vmem:[%s877 + $0x60] sm:$0xff]
        %v952 = vld [vmem:[%s877 + $0x68] sm:$0xf]
        %v953 = vld [vmem:[%s877 + $0x6c] sm:$0xff]
        %v954 = vld [vmem:[%s877 + $0x74] sm:$0xf]
        %v955 = vld [vmem:[%s877 + $0x78] sm:$0xff]
        %v956 = vld [vmem:[%s877 + $0x80] sm:$0xf]
        %v957 = vld [vmem:[%s877 + $0x84] sm:$0xff]
        %v958 = vld [vmem:[%s877 + $0x8c] sm:$0xf]
        %v959 = vld [vmem:[%s877 + $0x90] sm:$0xff]
        %v960 = vld [vmem:[%s877 + $0x98] sm:$0xf]
        %v961 = vld [vmem:[%s877 + $0x9c] sm:$0xff]
        %v962 = vld [vmem:[%s877 + $0xa4] sm:$0xf]
        %v963 = vld [vmem:[%s877 + $0xa8] sm:$0xff]
        %v964 = vld [vmem:[%s877 + $0xb0] sm:$0xf]
        %v965 = vld [vmem:[%s877 + $0xb4] sm:$0xff]
        %v966 = vld [vmem:[%s877 + $0xbc] sm:$0xf]
        %v967 = vld [vmem:[%s706] sm:$0x7]
        %v969 = vlaneseq
        %v970 = vshrl.u32 %v969, 7
        %v971 = vsub.s32 0, %v970
        %v972 = vrot.slane %v967, %v971
        %v973 = vlaneseq
        %v974 = vshrl.u32 %v973, 7
        %v975 = vsub.s32 1, %v974
        %v976 = vrot.slane %v967, %v975
        %v977 = vlaneseq
        %v978 = vshrl.u32 %v977, 7
        %v979 = vsub.s32 2, %v978
        %v980 = vrot.slane %v967, %v979
        %v1016 = vunpack.c.l.b16 %v935
        %v1017 = vunpack.c.h.b16 %v935
        %v1018 = vunpack.c.l.b16 %v936
        %v1019 = vunpack.c.l.b16 %v937
        %v1020 = vunpack.c.h.b16 %v937
        %v1021 = vunpack.c.l.b16 %v938
        %v1022 = vunpack.c.l.b16 %v939
        %v1023 = vunpack.c.h.b16 %v939
        %v1024 = vunpack.c.l.b16 %v940
        %v1025 = vunpack.c.l.b16 %v941
        %v1026 = vunpack.c.h.b16 %v941
        %v1027 = vunpack.c.l.b16 %v942
        %v1028 = vunpack.c.l.b16 %v943
        %v1029 = vunpack.c.h.b16 %v943
        %v1030 = vunpack.c.l.b16 %v944
        %v1031 = vunpack.c.l.b16 %v945
        %v1032 = vunpack.c.h.b16 %v945
        %v1033 = vunpack.c.l.b16 %v946
        %v1034 = vunpack.c.l.b16 %v947
        %v1035 = vunpack.c.h.b16 %v947
        %v1036 = vunpack.c.l.b16 %v948
        %v1037 = vunpack.c.l.b16 %v949
        %v1038 = vunpack.c.h.b16 %v949
        %v1039 = vunpack.c.l.b16 %v950
        %v1040 = vunpack.c.l.b16 %v951
        %v1041 = vunpack.c.h.b16 %v951
        %v1042 = vunpack.c.l.b16 %v952
        %v1043 = vunpack.c.l.b16 %v953
        %v1044 = vunpack.c.h.b16 %v953
        %v1045 = vunpack.c.l.b16 %v954
        %v1046 = vunpack.c.l.b16 %v955
        %v1047 = vunpack.c.h.b16 %v955
        %v1048 = vunpack.c.l.b16 %v956
        %v1049 = vunpack.c.l.b16 %v957
        %v1050 = vunpack.c.h.b16 %v957
        %v1051 = vunpack.c.l.b16 %v958
        %v1052 = vunpack.c.l.b16 %v959
        %v1053 = vunpack.c.h.b16 %v959
        %v1054 = vunpack.c.l.b16 %v960
        %v1055 = vunpack.c.l.b16 %v961
        %v1056 = vunpack.c.h.b16 %v961
        %v1057 = vunpack.c.l.b16 %v962
        %v1058 = vunpack.c.l.b16 %v963
        %v1059 = vunpack.c.h.b16 %v963
        %v1060 = vunpack.c.l.b16 %v964
        %v1061 = vunpack.c.l.b16 %v965
        %v1062 = vunpack.c.h.b16 %v965
        %v1063 = vunpack.c.l.b16 %v966
        %v1064 = vpack.c.b16 %v1019, %v1016
        %v1065 = vpack.c.b16 %v1020, %v1017
        %v1066 = vpack.c.b16 %v1021, %v1018
        %v1067 = vpack.c.b16 %v1025, %v1022
        %v1068 = vpack.c.b16 %v1026, %v1023
        %v1069 = vpack.c.b16 %v1027, %v1024
        %v1070 = vpack.c.b16 %v1031, %v1028
        %v1071 = vpack.c.b16 %v1032, %v1029
        %v1072 = vpack.c.b16 %v1033, %v1030
        %v1073 = vpack.c.b16 %v1037, %v1034
        %v1074 = vpack.c.b16 %v1038, %v1035
        %v1075 = vpack.c.b16 %v1039, %v1036
        %v1076 = vpack.c.b16 %v1043, %v1040
        %v1077 = vpack.c.b16 %v1044, %v1041
        %v1078 = vpack.c.b16 %v1045, %v1042
        %v1079 = vpack.c.b16 %v1049, %v1046
        %v1080 = vpack.c.b16 %v1050, %v1047
        %v1081 = vpack.c.b16 %v1051, %v1048
        %v1082 = vpack.c.b16 %v1055, %v1052
        %v1083 = vpack.c.b16 %v1056, %v1053
        %v1084 = vpack.c.b16 %v1057, %v1054
        %v1085 = vpack.c.b16 %v1061, %v1058
        %v1086 = vpack.c.b16 %v1062, %v1059
        %v1087 = vpack.c.b16 %v1063, %v1060
        %1112 = vmatprep.subr.bf16.mxu0 %v1065
        %1113 = vmatpush1.bf16.msra.mxu0 %v1064
        %1114 = vmatprep.subr.bf16.mxu0 %v1068
        %1115 = vmatpush1.bf16.msra.mxu0 %v1067
        %1116 = vmatprep.subr.bf16.mxu0 %v1071
        %1117 = vmatpush1.bf16.msra.mxu0 %v1070
        %1118 = vmatprep.subr.bf16.mxu0 %v1074
        %1119 = vmatpush1.bf16.msra.mxu0 %v1073
        %1120 = vmatprep.subr.bf16.mxu0 %v1077
        %1121 = vmatpush1.bf16.msra.mxu0 %v1076
        %1122 = vmatprep.subr.bf16.mxu0 %v1080
        %1123 = vmatpush1.bf16.msra.mxu0 %v1079
        %1124 = vmatprep.subr.bf16.mxu0 %v1083
        %1125 = vmatpush1.bf16.msra.mxu0 %v1082
        %1126 = vmatprep.subr.bf16.mxu0 %v1086
        %1127 = vmatpush1.bf16.msra.mxu0 %v1085
        %1128 = vmatprep.subr.bf16.mxu0 0
        %1129 = vmatpush1.bf16.msra.mxu0 0
        %1130 = vmatprep.subr.bf16.mxu0 0
        %1131 = vmatpush1.bf16.msra.mxu0 0
        %1132 = vmatprep.subr.bf16.mxu0 0
        %1133 = vmatpush1.bf16.msra.mxu0 0
        %1134 = vmatprep.subr.bf16.mxu0 0
        %1135 = vmatpush1.bf16.msra.mxu0 0
        %1136 = vmatprep.subr.bf16.mxu0 0
        %1137 = vmatpush1.bf16.msra.mxu0 0
        %1138 = vmatprep.subr.bf16.mxu0 0
        %1139 = vmatpush1.bf16.msra.mxu0 0
        %1140 = vmatprep.subr.bf16.mxu0 0
        %1141 = vmatpush1.bf16.msra.mxu0 0
        %1142 = vmatprep.subr.bf16.mxu0 0
        %1143 = vmatpush1.bf16.msra.mxu0 0
        %1144 = vmatprep.mubr.bf16.mxu0 0
        %1145 = vmatmul.mubr.bf16.gmra.mrb[0].mxu0 %v934
        %v1146 = vpop.f32.mrb[0].mxu0
        %v1147 = vadd.f32 %v972, %v1146
        %v1148 = vpop.f32.mrb[0].mxu0
        %v1149 = vadd.f32 %v976, %v1148
        %v1150 = vpop.f32.mrb[0].mxu0
        %v1151 = vadd.f32 %v972, %v1150
        %v1152 = vpop.f32.mrb[0].mxu0
        %v1153 = vadd.f32 %v976, %v1152
        %1154 = vdwg.mxu0
        %1155 = vmatprep.subr.bf16.mxu0 0
        %1156 = vmatpush1.bf16.msra.mxu0 %v1066
        %1157 = vmatprep.subr.bf16.mxu0 0
        %1158 = vmatpush1.bf16.msra.mxu0 %v1069
        %1159 = vmatprep.subr.bf16.mxu0 0
        %1160 = vmatpush1.bf16.msra.mxu0 %v1072
        %1161 = vmatprep.subr.bf16.mxu0 0
        %1162 = vmatpush1.bf16.msra.mxu0 %v1075
        %1163 = vmatprep.subr.bf16.mxu0 0
        %1164 = vmatpush1.bf16.msra.mxu0 %v1078
        %1165 = vmatprep.subr.bf16.mxu0 0
        %1166 = vmatpush1.bf16.msra.mxu0 %v1081
        %1167 = vmatprep.subr.bf16.mxu0 0
        %1168 = vmatpush1.bf16.msra.mxu0 %v1084
        %1169 = vmatprep.subr.bf16.mxu0 0
        %1170 = vmatpush1.bf16.msra.mxu0 %v1087
        %1171 = vmatprep.subr.bf16.mxu0 0
        %1172 = vmatpush1.bf16.msra.mxu0 0
        %1173 = vmatprep.subr.bf16.mxu0 0
        %1174 = vmatpush1.bf16.msra.mxu0 0
        %1175 = vmatprep.subr.bf16.mxu0 0
        %1176 = vmatpush1.bf16.msra.mxu0 0
        %1177 = vmatprep.subr.bf16.mxu0 0
        %1178 = vmatpush1.bf16.msra.mxu0 0
        %1179 = vmatprep.subr.bf16.mxu0 0
        %1180 = vmatpush1.bf16.msra.mxu0 0
        %1181 = vmatprep.subr.bf16.mxu0 0
        %1182 = vmatpush1.bf16.msra.mxu0 0
        %1183 = vmatprep.subr.bf16.mxu0 0
        %1184 = vmatpush1.bf16.msra.mxu0 0
        %1185 = vmatprep.subr.bf16.mxu0 0
        %1186 = vmatpush1.bf16.msra.mxu0 0
        %1187 = vmatprep.mubr.bf16.mxu0 0
        %1188 = vmatmul.mubr.bf16.gmra.mrb[0].mxu0 %v934
        %v1189 = vpop.f32.mrb[0].mxu0
        %v1190 = vadd.f32 %v980, %v1189
        %v1191 = vpop.f32.mrb[0].mxu0
        %v1192 = vpop.f32.mrb[0].mxu0
        %v1193 = vadd.f32 %v980, %v1192
        %v1194 = vpop.f32.mrb[0].mxu0
        %1195 = vdwg.mxu0
        %v1196 = vld [vmem:[%s1] sm:$0xff]
        %v1197 = vld [vmem:[%s1 + $0x8] sm:$0xff]
        %v1198 = vpack.c.bf16 %v1151, %v1147
        %v1199 = vpack.c.bf16 %v1153, %v1149
        %v1200 = vpack.c.bf16 %v1193, %v1190
        %vm1201 = vcmask 261120
        %v1203 = vsel %vm1201, %v1198, 0
        %v1206 = vsel %vm1201, %v1199, 0
        %1208 = vmatprep.subr.bf16.mxu0 0
        %1209 = vmatpush1.bf16.xpose.msra.mxu0 %v1206
        %1210 = vmatprep.subr.bf16.mxu0 0
        %1211 = vmatpush1.bf16.xpose.msra.mxu0 0
        %1212 = vmatprep.subr.bf16.mxu0 0
        %1213 = vmatpush1.bf16.xpose.msra.mxu0 0
        %1214 = vmatprep.subr.bf16.mxu0 0
        %1215 = vmatpush1.bf16.xpose.msra.mxu0 0
        %1216 = vmatprep.subr.bf16.mxu0 0
        %1217 = vmatpush1.bf16.xpose.msra.mxu0 0
        %1218 = vmatprep.subr.bf16.mxu0 0
        %1219 = vmatpush1.bf16.xpose.msra.mxu0 0
        %1220 = vmatprep.subr.bf16.mxu0 0
        %1221 = vmatpush1.bf16.xpose.msra.mxu0 0
        %1222 = vmatprep.subr.bf16.mxu0 0
        %1223 = vmatpush1.bf16.xpose.msra.mxu0 0
        %1224 = vmatprep.subr.bf16.mxu0 0
        %1225 = vmatpush1.bf16.xpose.msra.mxu0 0
        %1226 = vmatprep.subr.bf16.mxu0 0
        %1227 = vmatpush1.bf16.xpose.msra.mxu0 0
        %1228 = vmatprep.subr.bf16.mxu0 0
        %1229 = vmatpush1.bf16.xpose.msra.mxu0 0
        %1230 = vmatprep.subr.bf16.mxu0 0
        %1231 = vmatpush1.bf16.xpose.msra.mxu0 0
        %1232 = vmatprep.subr.bf16.mxu0 0
        %1233 = vmatpush1.bf16.xpose.msra.mxu0 0
        %1234 = vmatprep.subr.bf16.mxu0 0
        %1235 = vmatpush1.bf16.xpose.msra.mxu0 0
        %1236 = vmatprep.subr.bf16.mxu0 0
        %1237 = vmatpush1.bf16.xpose.msra.mxu0 0
        %1238 = vmatprep.subr.bf16.mxu0 0
        %1239 = vmatpush1.bf16.xpose.msra.mxu0 0
        %1240 = vmatprep.mubr.bf16.mxu0 0
        %1241 = vmatmul.mubr.bf16.gmra.mrb[0].mxu0 %v1203
        %v1242 = vpop.f32.mrb[0].mxu0
        %v1243 = vadd.f32 0.0, %v1242
        %v1244 = vpop.f32.mrb[0].mxu0
        %v1245 = vpop.f32.mrb[0].mxu0
        %v1246 = vadd.f32 0.0, %v1245
        %v1247 = vpop.f32.mrb[0].mxu0
        %1248 = vdwg.mxu0
        %v1249 = vmul.f32 %v1243, 0.17677669
        %v1250 = vmul.f32 %v1246, 0.17677669
        %v1251 = vadd.f32 %v1249, %v1196
        %v1252 = vadd.f32 %v1250, %v1197
        %vm1253 = vcmask 130048
        %v1254 = vsel %vm1253, %v1251, -inf
        %1255 = vmax.xlane.f32.xlu0 %v1254
        %v1256 = vpop.xlane.xlu0 %1255
        %v1257 = vsel %vm1253, %v1252, -inf
        %1258 = vmax.xlane.f32.xlu0 %v1257
        %v1259 = vpop.xlane.xlu0 %1258
        %v1260 = vsub.f32 %v1251, %v1256
        %v1261 = vsub.f32 %v1252, %v1259
        %v1262 = vmul.f32 %v1260, 1.442695
        %v1263 = vpow.pop %v1262
        %v1264 = vmul.f32 %v1261, 1.442695
        %v1265 = vpow.pop %v1264
        %v1266 = vsel %vm1253, %v1263, 0.0
        %1267 = vadd.xlane.f32.xlu0 %v1266
        %v1268 = vpop.xlane.xlu0 %1267
        %v1269 = vsel %vm1253, %v1265, 0.0
        %1270 = vadd.xlane.f32.xlu0 %v1269
        %v1271 = vpop.xlane.xlu0 %1270
        %v1272 = vrcp.pop %v1268
        %v1273 = vrcp.pop %v1271
        %v1274 = vmul.f32 %v1263, %v1272
        %v1275 = vmul.f32 %v1265, %v1273
        %v1276 = vpack.c.bf16 %v1275, %v1274
        %v1278 = vsel %vm1253, %v1276, 0
        %1280 = vmatprep.subr.bf16.mxu0 0
        %1281 = vmatpush1.bf16.msra.mxu0 %v1200
        %1282 = vmatprep.subr.bf16.mxu0 0
        %1283 = vmatpush1.bf16.msra.mxu0 0
        %1284 = vmatprep.subr.bf16.mxu0 0
        %1285 = vmatpush1.bf16.msra.mxu0 0
        %1286 = vmatprep.subr.bf16.mxu0 0
        %1287 = vmatpush1.bf16.msra.mxu0 0
        %1288 = vmatprep.subr.bf16.mxu0 0
        %1289 = vmatpush1.bf16.msra.mxu0 0
        %1290 = vmatprep.subr.bf16.mxu0 0
        %1291 = vmatpush1.bf16.msra.mxu0 0
        %1292 = vmatprep.subr.bf16.mxu0 0
        %1293 = vmatpush1.bf16.msra.mxu0 0
        %1294 = vmatprep.subr.bf16.mxu0 0
        %1295 = vmatpush1.bf16.msra.mxu0 0
        %1296 = vmatprep.subr.bf16.mxu0 0
        %1297 = vmatpush1.bf16.msra.mxu0 0
        %1298 = vmatprep.subr.bf16.mxu0 0
        %1299 = vmatpush1.bf16.msra.mxu0 0
        %1300 = vmatprep.subr.bf16.mxu0 0
        %1301 = vmatpush1.bf16.msra.mxu0 0
        %1302 = vmatprep.subr.bf16.mxu0 0
        %1303 = vmatpush1.bf16.msra.mxu0 0
        %1304 = vmatprep.subr.bf16.mxu0 0
        %1305 = vmatpush1.bf16.msra.mxu0 0
        %1306 = vmatprep.subr.bf16.mxu0 0
        %1307 = vmatpush1.bf16.msra.mxu0 0
        %1308 = vmatprep.subr.bf16.mxu0 0
        %1309 = vmatpush1.bf16.msra.mxu0 0
        %1310 = vmatprep.subr.bf16.mxu0 0
        %1311 = vmatpush1.bf16.msra.mxu0 0
        %1312 = vmatprep.mubr.bf16.mxu0 0
        %1313 = vmatmul.mubr.bf16.gmra.mrb[0].mxu0 %v1278
        %v1314 = vpop.f32.mrb[0].mxu0
        %v1315 = vadd.f32 0.0, %v1314
        %v1316 = vpop.f32.mrb[0].mxu0
        %v1317 = vpop.f32.mrb[0].mxu0
        %v1318 = vadd.f32 0.0, %v1317
        %v1319 = vpop.f32.mrb[0].mxu0
        %1320 = vdwg.mxu0
        %1322 = vrot.lane.b32.xlu0 %v1198, 96
        %v1323 = vpop.permute.xlu0 %1322
        %1325 = vrot.lane.b32.xlu0 %v1199, 96
        %v1326 = vpop.permute.xlu0 %1325
        %v1328 = vsel %vm1201, %v1323, 0
        %v1331 = vsel %vm1201, %v1326, 0
        %1333 = vmatprep.subr.bf16.mxu0 0
        %1334 = vmatpush1.bf16.xpose.msra.mxu0 %v1331
        %1335 = vmatprep.subr.bf16.mxu0 0
        %1336 = vmatpush1.bf16.xpose.msra.mxu0 0
        %1337 = vmatprep.subr.bf16.mxu0 0
        %1338 = vmatpush1.bf16.xpose.msra.mxu0 0
        %1339 = vmatprep.subr.bf16.mxu0 0
        %1340 = vmatpush1.bf16.xpose.msra.mxu0 0
        %1341 = vmatprep.subr.bf16.mxu0 0
        %1342 = vmatpush1.bf16.xpose.msra.mxu0 0
        %1343 = vmatprep.subr.bf16.mxu0 0
        %1344 = vmatpush1.bf16.xpose.msra.mxu0 0
        %1345 = vmatprep.subr.bf16.mxu0 0
        %1346 = vmatpush1.bf16.xpose.msra.mxu0 0
        %1347 = vmatprep.subr.bf16.mxu0 0
        %1348 = vmatpush1.bf16.xpose.msra.mxu0 0
        %1349 = vmatprep.subr.bf16.mxu0 0
        %1350 = vmatpush1.bf16.xpose.msra.mxu0 0
        %1351 = vmatprep.subr.bf16.mxu0 0
        %1352 = vmatpush1.bf16.xpose.msra.mxu0 0
        %1353 = vmatprep.subr.bf16.mxu0 0
        %1354 = vmatpush1.bf16.xpose.msra.mxu0 0
        %1355 = vmatprep.subr.bf16.mxu0 0
        %1356 = vmatpush1.bf16.xpose.msra.mxu0 0
        %1357 = vmatprep.subr.bf16.mxu0 0
        %1358 = vmatpush1.bf16.xpose.msra.mxu0 0
        %1359 = vmatprep.subr.bf16.mxu0 0
        %1360 = vmatpush1.bf16.xpose.msra.mxu0 0
        %1361 = vmatprep.subr.bf16.mxu0 0
        %1362 = vmatpush1.bf16.xpose.msra.mxu0 0
        %1363 = vmatprep.subr.bf16.mxu0 0
        %1364 = vmatpush1.bf16.xpose.msra.mxu0 0
        %1365 = vmatprep.mubr.bf16.mxu0 0
        %1366 = vmatmul.mubr.bf16.gmra.mrb[0].mxu0 %v1328
        %v1367 = vpop.f32.mrb[0].mxu0
        %v1368 = vadd.f32 0.0, %v1367
        %v1369 = vpop.f32.mrb[0].mxu0
        %v1370 = vpop.f32.mrb[0].mxu0
        %v1371 = vadd.f32 0.0, %v1370
        %v1372 = vpop.f32.mrb[0].mxu0
        %1373 = vdwg.mxu0
        %v1374 = vmul.f32 %v1368, 0.17677669
        %v1375 = vmul.f32 %v1371, 0.17677669
        %v1376 = vadd.f32 %v1374, %v1196
        %v1377 = vadd.f32 %v1375, %v1197
        %v1378 = vsel %vm1253, %v1376, -inf
        %1379 = vmax.xlane.f32.xlu0 %v1378
        %v1380 = vpop.xlane.xlu0 %1379
        %v1381 = vsel %vm1253, %v1377, -inf
        %1382 = vmax.xlane.f32.xlu0 %v1381
        %v1383 = vpop.xlane.xlu0 %1382
        %v1384 = vsub.f32 %v1376, %v1380
        %v1385 = vsub.f32 %v1377, %v1383
        %v1386 = vmul.f32 %v1384, 1.442695
        %v1387 = vpow.pop %v1386
        %v1388 = vmul.f32 %v1385, 1.442695
        %v1389 = vpow.pop %v1388
        %v1390 = vsel %vm1253, %v1387, 0.0
        %1391 = vadd.xlane.f32.xlu0 %v1390
        %v1392 = vpop.xlane.xlu0 %1391
        %v1393 = vsel %vm1253, %v1389, 0.0
        %1394 = vadd.xlane.f32.xlu0 %v1393
        %v1395 = vpop.xlane.xlu0 %1394
        %v1396 = vrcp.pop %v1392
        %v1397 = vrcp.pop %v1395
        %v1398 = vmul.f32 %v1387, %v1396
        %v1399 = vmul.f32 %v1389, %v1397
        %v1400 = vpack.c.bf16 %v1399, %v1398
        %1402 = vrot.lane.b32.xlu0 %v1200, 96
        %v1403 = vpop.permute.xlu0 %1402
        %v1406 = vsel %vm1253, %v1400, 0
        %1408 = vmatprep.subr.bf16.mxu0 0
        %1409 = vmatpush1.bf16.msra.mxu0 %v1403
        %1410 = vmatprep.subr.bf16.mxu0 0
        %1411 = vmatpush1.bf16.msra.mxu0 0
        %1412 = vmatprep.subr.bf16.mxu0 0
        %1413 = vmatpush1.bf16.msra.mxu0 0
        %1414 = vmatprep.subr.bf16.mxu0 0
        %1415 = vmatpush1.bf16.msra.mxu0 0
        %1416 = vmatprep.subr.bf16.mxu0 0
        %1417 = vmatpush1.bf16.msra.mxu0 0
        %1418 = vmatprep.subr.bf16.mxu0 0
        %1419 = vmatpush1.bf16.msra.mxu0 0
        %1420 = vmatprep.subr.bf16.mxu0 0
        %1421 = vmatpush1.bf16.msra.mxu0 0
        %1422 = vmatprep.subr.bf16.mxu0 0
        %1423 = vmatpush1.bf16.msra.mxu0 0
        %1424 = vmatprep.subr.bf16.mxu0 0
        %1425 = vmatpush1.bf16.msra.mxu0 0
        %1426 = vmatprep.subr.bf16.mxu0 0
        %1427 = vmatpush1.bf16.msra.mxu0 0
        %1428 = vmatprep.subr.bf16.mxu0 0
        %1429 = vmatpush1.bf16.msra.mxu0 0
        %1430 = vmatprep.subr.bf16.mxu0 0
        %1431 = vmatpush1.bf16.msra.mxu0 0
        %1432 = vmatprep.subr.bf16.mxu0 0
        %1433 = vmatpush1.bf16.msra.mxu0 0
        %1434 = vmatprep.subr.bf16.mxu0 0
        %1435 = vmatpush1.bf16.msra.mxu0 0
        %1436 = vmatprep.subr.bf16.mxu0 0
        %1437 = vmatpush1.bf16.msra.mxu0 0
        %1438 = vmatprep.subr.bf16.mxu0 0
        %1439 = vmatpush1.bf16.msra.mxu0 0
        %1440 = vmatprep.mubr.bf16.mxu0 0
        %1441 = vmatmul.mubr.bf16.gmra.mrb[0].mxu0 %v1406
        %v1442 = vpop.f32.mrb[0].mxu0
        %v1443 = vadd.f32 0.0, %v1442
        %v1444 = vpop.f32.mrb[0].mxu0
        %v1445 = vpop.f32.mrb[0].mxu0
        %v1446 = vadd.f32 0.0, %v1445
        %v1447 = vpop.f32.mrb[0].mxu0
        %1448 = vdwg.mxu0
        %1449 = vrot.lane.b32.xlu0 %v1198, 64
        %v1450 = vpop.permute.xlu0 %1449
        %1451 = vrot.lane.b32.xlu0 %v1199, 64
        %v1452 = vpop.permute.xlu0 %1451
        %v1454 = vsel %vm1201, %v1450, 0
        %v1457 = vsel %vm1201, %v1452, 0
        %1459 = vmatprep.subr.bf16.mxu0 0
        %1460 = vmatpush1.bf16.xpose.msra.mxu0 %v1457
        %1461 = vmatprep.subr.bf16.mxu0 0
        %1462 = vmatpush1.bf16.xpose.msra.mxu0 0
        %1463 = vmatprep.subr.bf16.mxu0 0
        %1464 = vmatpush1.bf16.xpose.msra.mxu0 0
        %1465 = vmatprep.subr.bf16.mxu0 0
        %1466 = vmatpush1.bf16.xpose.msra.mxu0 0
        %1467 = vmatprep.subr.bf16.mxu0 0
        %1468 = vmatpush1.bf16.xpose.msra.mxu0 0
        %1469 = vmatprep.subr.bf16.mxu0 0
        %1470 = vmatpush1.bf16.xpose.msra.mxu0 0
        %1471 = vmatprep.subr.bf16.mxu0 0
        %1472 = vmatpush1.bf16.xpose.msra.mxu0 0
        %1473 = vmatprep.subr.bf16.mxu0 0
        %1474 = vmatpush1.bf16.xpose.msra.mxu0 0
        %1475 = vmatprep.subr.bf16.mxu0 0
        %1476 = vmatpush1.bf16.xpose.msra.mxu0 0
        %1477 = vmatprep.subr.bf16.mxu0 0
        %1478 = vmatpush1.bf16.xpose.msra.mxu0 0
        %1479 = vmatprep.subr.bf16.mxu0 0
        %1480 = vmatpush1.bf16.xpose.msra.mxu0 0
        %1481 = vmatprep.subr.bf16.mxu0 0
        %1482 = vmatpush1.bf16.xpose.msra.mxu0 0
        %1483 = vmatprep.subr.bf16.mxu0 0
        %1484 = vmatpush1.bf16.xpose.msra.mxu0 0
        %1485 = vmatprep.subr.bf16.mxu0 0
        %1486 = vmatpush1.bf16.xpose.msra.mxu0 0
        %1487 = vmatprep.subr.bf16.mxu0 0
        %1488 = vmatpush1.bf16.xpose.msra.mxu0 0
        %1489 = vmatprep.subr.bf16.mxu0 0
        %1490 = vmatpush1.bf16.xpose.msra.mxu0 0
        %1491 = vmatprep.mubr.bf16.mxu0 0
        %1492 = vmatmul.mubr.bf16.gmra.mrb[0].mxu0 %v1454
        %v1493 = vpop.f32.mrb[0].mxu0
        %v1494 = vadd.f32 0.0, %v1493
        %v1495 = vpop.f32.mrb[0].mxu0
        %v1496 = vpop.f32.mrb[0].mxu0
        %v1497 = vadd.f32 0.0, %v1496
        %v1498 = vpop.f32.mrb[0].mxu0
        %1499 = vdwg.mxu0
        %v1500 = vmul.f32 %v1494, 0.17677669
        %v1501 = vmul.f32 %v1497, 0.17677669
        %v1502 = vadd.f32 %v1500, %v1196
        %v1503 = vadd.f32 %v1501, %v1197
        %v1504 = vsel %vm1253, %v1502, -inf
        %1505 = vmax.xlane.f32.xlu0 %v1504
        %v1506 = vpop.xlane.xlu0 %1505
        %v1507 = vsel %vm1253, %v1503, -inf
        %1508 = vmax.xlane.f32.xlu0 %v1507
        %v1509 = vpop.xlane.xlu0 %1508
        %v1510 = vsub.f32 %v1502, %v1506
        %v1511 = vsub.f32 %v1503, %v1509
        %v1512 = vmul.f32 %v1510, 1.442695
        %v1513 = vpow.pop %v1512
        %v1514 = vmul.f32 %v1511, 1.442695
        %v1515 = vpow.pop %v1514
        %v1516 = vsel %vm1253, %v1513, 0.0
        %1517 = vadd.xlane.f32.xlu0 %v1516
        %v1518 = vpop.xlane.xlu0 %1517
        %v1519 = vsel %vm1253, %v1515, 0.0
        %1520 = vadd.xlane.f32.xlu0 %v1519
        %v1521 = vpop.xlane.xlu0 %1520
        %v1522 = vrcp.pop %v1518
        %v1523 = vrcp.pop %v1521
        %v1524 = vmul.f32 %v1513, %v1522
        %v1525 = vmul.f32 %v1515, %v1523
        %v1526 = vpack.c.bf16 %v1525, %v1524
        %1527 = vrot.lane.b32.xlu0 %v1200, 64
        %v1528 = vpop.permute.xlu0 %1527
        %v1531 = vsel %vm1253, %v1526, 0
        %1533 = vmatprep.subr.bf16.mxu0 0
        %1534 = vmatpush1.bf16.msra.mxu0 %v1528
        %1535 = vmatprep.subr.bf16.mxu0 0
        %1536 = vmatpush1.bf16.msra.mxu0 0
        %1537 = vmatprep.subr.bf16.mxu0 0
        %1538 = vmatpush1.bf16.msra.mxu0 0
        %1539 = vmatprep.subr.bf16.mxu0 0
        %1540 = vmatpush1.bf16.msra.mxu0 0
        %1541 = vmatprep.subr.bf16.mxu0 0
        %1542 = vmatpush1.bf16.msra.mxu0 0
        %1543 = vmatprep.subr.bf16.mxu0 0
        %1544 = vmatpush1.bf16.msra.mxu0 0
        %1545 = vmatprep.subr.bf16.mxu0 0
        %1546 = vmatpush1.bf16.msra.mxu0 0
        %1547 = vmatprep.subr.bf16.mxu0 0
        %1548 = vmatpush1.bf16.msra.mxu0 0
        %1549 = vmatprep.subr.bf16.mxu0 0
        %1550 = vmatpush1.bf16.msra.mxu0 0
        %1551 = vmatprep.subr.bf16.mxu0 0
        %1552 = vmatpush1.bf16.msra.mxu0 0
        %1553 = vmatprep.subr.bf16.mxu0 0
        %1554 = vmatpush1.bf16.msra.mxu0 0
        %1555 = vmatprep.subr.bf16.mxu0 0
        %1556 = vmatpush1.bf16.msra.mxu0 0
        %1557 = vmatprep.subr.bf16.mxu0 0
        %1558 = vmatpush1.bf16.msra.mxu0 0
        %1559 = vmatprep.subr.bf16.mxu0 0
        %1560 = vmatpush1.bf16.msra.mxu0 0
        %1561 = vmatprep.subr.bf16.mxu0 0
        %1562 = vmatpush1.bf16.msra.mxu0 0
        %1563 = vmatprep.subr.bf16.mxu0 0
        %1564 = vmatpush1.bf16.msra.mxu0 0
        %1565 = vmatprep.mubr.bf16.mxu0 0
        %1566 = vmatmul.mubr.bf16.gmra.mrb[0].mxu0 %v1531
        %v1567 = vpop.f32.mrb[0].mxu0
        %v1568 = vadd.f32 0.0, %v1567
        %v1569 = vpop.f32.mrb[0].mxu0
        %v1570 = vpop.f32.mrb[0].mxu0
        %v1571 = vadd.f32 0.0, %v1570
        %v1572 = vpop.f32.mrb[0].mxu0
        %1573 = vdwg.mxu0
        %1574 = vrot.lane.b32.xlu0 %v1198, 32
        %v1575 = vpop.permute.xlu0 %1574
        %1576 = vrot.lane.b32.xlu0 %v1199, 32
        %v1577 = vpop.permute.xlu0 %1576
        %v1579 = vsel %vm1201, %v1575, 0
        %v1582 = vsel %vm1201, %v1577, 0
        %1584 = vmatprep.subr.bf16.mxu0 0
        %1585 = vmatpush1.bf16.xpose.msra.mxu0 %v1582
        %1586 = vmatprep.subr.bf16.mxu0 0
        %1587 = vmatpush1.bf16.xpose.msra.mxu0 0
        %1588 = vmatprep.subr.bf16.mxu0 0
        %1589 = vmatpush1.bf16.xpose.msra.mxu0 0
        %1590 = vmatprep.subr.bf16.mxu0 0
        %1591 = vmatpush1.bf16.xpose.msra.mxu0 0
        %1592 = vmatprep.subr.bf16.mxu0 0
        %1593 = vmatpush1.bf16.xpose.msra.mxu0 0
        %1594 = vmatprep.subr.bf16.mxu0 0
        %1595 = vmatpush1.bf16.xpose.msra.mxu0 0
        %1596 = vmatprep.subr.bf16.mxu0 0
        %1597 = vmatpush1.bf16.xpose.msra.mxu0 0
        %1598 = vmatprep.subr.bf16.mxu0 0
        %1599 = vmatpush1.bf16.xpose.msra.mxu0 0
        %1600 = vmatprep.subr.bf16.mxu0 0
        %1601 = vmatpush1.bf16.xpose.msra.mxu0 0
        %1602 = vmatprep.subr.bf16.mxu0 0
        %1603 = vmatpush1.bf16.xpose.msra.mxu0 0
        %1604 = vmatprep.subr.bf16.mxu0 0
        %1605 = vmatpush1.bf16.xpose.msra.mxu0 0
        %1606 = vmatprep.subr.bf16.mxu0 0
        %1607 = vmatpush1.bf16.xpose.msra.mxu0 0
        %1608 = vmatprep.subr.bf16.mxu0 0
        %1609 = vmatpush1.bf16.xpose.msra.mxu0 0
        %1610 = vmatprep.subr.bf16.mxu0 0
        %1611 = vmatpush1.bf16.xpose.msra.mxu0 0
        %1612 = vmatprep.subr.bf16.mxu0 0
        %1613 = vmatpush1.bf16.xpose.msra.mxu0 0
        %1614 = vmatprep.subr.bf16.mxu0 0
        %1615 = vmatpush1.bf16.xpose.msra.mxu0 0
        %1616 = vmatprep.mubr.bf16.mxu0 0
        %1617 = vmatmul.mubr.bf16.gmra.mrb[0].mxu0 %v1579
        %v1618 = vpop.f32.mrb[0].mxu0
        %v1619 = vadd.f32 0.0, %v1618
        %v1620 = vpop.f32.mrb[0].mxu0
        %v1621 = vpop.f32.mrb[0].mxu0
        %v1622 = vadd.f32 0.0, %v1621
        %v1623 = vpop.f32.mrb[0].mxu0
        %1624 = vdwg.mxu0
        %v1625 = vmul.f32 %v1619, 0.17677669
        %v1626 = vmul.f32 %v1622, 0.17677669
        %v1627 = vadd.f32 %v1625, %v1196
        %v1628 = vadd.f32 %v1626, %v1197
        %v1629 = vsel %vm1253, %v1627, -inf
        %1630 = vmax.xlane.f32.xlu0 %v1629
        %v1631 = vpop.xlane.xlu0 %1630
        %v1632 = vsel %vm1253, %v1628, -inf
        %1633 = vmax.xlane.f32.xlu0 %v1632
        %v1634 = vpop.xlane.xlu0 %1633
        %v1635 = vsub.f32 %v1627, %v1631
        %v1636 = vsub.f32 %v1628, %v1634
        %v1637 = vmul.f32 %v1635, 1.442695
        %v1638 = vpow.pop %v1637
        %v1639 = vmul.f32 %v1636, 1.442695
        %v1640 = vpow.pop %v1639
        %v1641 = vsel %vm1253, %v1638, 0.0
        %1642 = vadd.xlane.f32.xlu0 %v1641
        %v1643 = vpop.xlane.xlu0 %1642
        %v1644 = vsel %vm1253, %v1640, 0.0
        %1645 = vadd.xlane.f32.xlu0 %v1644
        %v1646 = vpop.xlane.xlu0 %1645
        %v1647 = vrcp.pop %v1643
        %v1648 = vrcp.pop %v1646
        %v1649 = vmul.f32 %v1638, %v1647
        %v1650 = vmul.f32 %v1640, %v1648
        %v1651 = vpack.c.bf16 %v1650, %v1649
        %1652 = vrot.lane.b32.xlu0 %v1200, 32
        %v1653 = vpop.permute.xlu0 %1652
        %v1656 = vsel %vm1253, %v1651, 0
        %1658 = vmatprep.subr.bf16.mxu0 0
        %1659 = vmatpush1.bf16.msra.mxu0 %v1653
        %1660 = vmatprep.subr.bf16.mxu0 0
        %1661 = vmatpush1.bf16.msra.mxu0 0
        %1662 = vmatprep.subr.bf16.mxu0 0
        %1663 = vmatpush1.bf16.msra.mxu0 0
        %1664 = vmatprep.subr.bf16.mxu0 0
        %1665 = vmatpush1.bf16.msra.mxu0 0
        %1666 = vmatprep.subr.bf16.mxu0 0
        %1667 = vmatpush1.bf16.msra.mxu0 0
        %1668 = vmatprep.subr.bf16.mxu0 0
        %1669 = vmatpush1.bf16.msra.mxu0 0
        %1670 = vmatprep.subr.bf16.mxu0 0
        %1671 = vmatpush1.bf16.msra.mxu0 0
        %1672 = vmatprep.subr.bf16.mxu0 0
        %1673 = vmatpush1.bf16.msra.mxu0 0
        %1674 = vmatprep.subr.bf16.mxu0 0
        %1675 = vmatpush1.bf16.msra.mxu0 0
        %1676 = vmatprep.subr.bf16.mxu0 0
        %1677 = vmatpush1.bf16.msra.mxu0 0
        %1678 = vmatprep.subr.bf16.mxu0 0
        %1679 = vmatpush1.bf16.msra.mxu0 0
        %1680 = vmatprep.subr.bf16.mxu0 0
        %1681 = vmatpush1.bf16.msra.mxu0 0
        %1682 = vmatprep.subr.bf16.mxu0 0
        %1683 = vmatpush1.bf16.msra.mxu0 0
        %1684 = vmatprep.subr.bf16.mxu0 0
        %1685 = vmatpush1.bf16.msra.mxu0 0
        %1686 = vmatprep.subr.bf16.mxu0 0
        %1687 = vmatpush1.bf16.msra.mxu0 0
        %1688 = vmatprep.subr.bf16.mxu0 0
        %1689 = vmatpush1.bf16.msra.mxu0 0
        %1690 = vmatprep.mubr.bf16.mxu0 0
        %1691 = vmatmul.mubr.bf16.gmra.mrb[0].mxu0 %v1656
        %v1692 = vpop.f32.mrb[0].mxu0
        %v1693 = vadd.f32 0.0, %v1692
        %v1694 = vpop.f32.mrb[0].mxu0
        %v1695 = vpop.f32.mrb[0].mxu0
        %v1696 = vadd.f32 0.0, %v1695
        %v1697 = vpop.f32.mrb[0].mxu0
        %1698 = vdwg.mxu0
        %1701 = vrot.lane.b32.xlu0 %v1443, 32
        %v1702 = vpop.permute.xlu0 %1701
        %1703 = vrot.lane.b32.xlu0 %v1446, 32
        %v1704 = vpop.permute.xlu0 %1703
        %1709 = vrot.lane.b32.xlu0 %v1568, 64
        %v1710 = vpop.permute.xlu0 %1709
        %1711 = vrot.lane.b32.xlu0 %v1571, 64
        %v1712 = vpop.permute.xlu0 %1711
        %1717 = vrot.lane.b32.xlu0 %v1693, 96
        %v1718 = vpop.permute.xlu0 %1717
        %1719 = vrot.lane.b32.xlu0 %v1696, 96
        %v1720 = vpop.permute.xlu0 %1719
        %v1723 = vsel %vm1201, %v1315, %v1702
        %v1724 = vsel %vm1201, %v1318, %v1704
        %vm1725 = vcmask 523264
        %v1726 = vsel %vm1725, %v1723, %v1710
        %v1727 = vsel %vm1725, %v1724, %v1712
        %vm1728 = vcmask 785408
        %v1729 = vsel %vm1728, %v1726, %v1718
        %v1730 = vsel %vm1728, %v1727, %v1720
        %v1731 = vpack.c.bf16 %v1730, %v1729
        %v1732 = vld [vmem:[%s715] sm:$0xf]
        %v1733 = vld [vmem:[%s715 + $0x4] sm:$0xf]
        %v1734 = vld [vmem:[%s715 + $0x8] sm:$0xf]
        %v1735 = vld [vmem:[%s715 + $0xc] sm:$0xf]
        %v1736 = vld [vmem:[%s715 + $0x10] sm:$0xf]
        %v1737 = vld [vmem:[%s715 + $0x14] sm:$0xf]
        %v1738 = vld [vmem:[%s715 + $0x18] sm:$0xf]
        %v1739 = vld [vmem:[%s715 + $0x1c] sm:$0xf]
        %v1740 = vld [vmem:[%s715 + $0x20] sm:$0xf]
        %v1741 = vld [vmem:[%s715 + $0x24] sm:$0xf]
        %v1742 = vld [vmem:[%s715 + $0x28] sm:$0xf]
        %v1743 = vld [vmem:[%s715 + $0x2c] sm:$0xf]
        %v1744 = vld [vmem:[%s715 + $0x30] sm:$0xf]
        %v1745 = vld [vmem:[%s715 + $0x34] sm:$0xf]
        %v1746 = vld [vmem:[%s715 + $0x38] sm:$0xf]
        %v1747 = vld [vmem:[%s715 + $0x3c] sm:$0xf]
        %v1748 = vld [vmem:[%s723] sm:$0x1]
        %v1750 = vlaneseq
        %v1751 = vshrl.u32 %v1750, 7
        %v1752 = vsub.s32 0, %v1751
        %v1753 = vrot.slane %v1748, %v1752
        %v1771 = vunpack.c.l.b16 %v1732
        %v1772 = vunpack.c.l.b16 %v1733
        %v1773 = vunpack.c.l.b16 %v1734
        %v1774 = vunpack.c.l.b16 %v1735
        %v1775 = vunpack.c.l.b16 %v1736
        %v1776 = vunpack.c.l.b16 %v1737
        %v1777 = vunpack.c.l.b16 %v1738
        %v1778 = vunpack.c.l.b16 %v1739
        %v1779 = vunpack.c.l.b16 %v1740
        %v1780 = vunpack.c.l.b16 %v1741
        %v1781 = vunpack.c.l.b16 %v1742
        %v1782 = vunpack.c.l.b16 %v1743
        %v1783 = vunpack.c.l.b16 %v1744
        %v1784 = vunpack.c.l.b16 %v1745
        %v1785 = vunpack.c.l.b16 %v1746
        %v1786 = vunpack.c.l.b16 %v1747
        %v1787 = vpack.c.b16 %v1772, %v1771
        %v1788 = vpack.c.b16 %v1774, %v1773
        %v1789 = vpack.c.b16 %v1776, %v1775
        %v1790 = vpack.c.b16 %v1778, %v1777
        %v1791 = vpack.c.b16 %v1780, %v1779
        %v1792 = vpack.c.b16 %v1782, %v1781
        %v1793 = vpack.c.b16 %v1784, %v1783
        %v1794 = vpack.c.b16 %v1786, %v1785
        %1803 = vmatprep.subr.bf16.mxu0 0
        %1804 = vmatpush1.bf16.msra.mxu0 %v1787
        %1805 = vmatprep.subr.bf16.mxu0 0
        %1806 = vmatpush1.bf16.msra.mxu0 %v1788
        %1807 = vmatprep.subr.bf16.mxu0 0
        %1808 = vmatpush1.bf16.msra.mxu0 %v1789
        %1809 = vmatprep.subr.bf16.mxu0 0
        %1810 = vmatpush1.bf16.msra.mxu0 %v1790
        %1811 = vmatprep.subr.bf16.mxu0 0
        %1812 = vmatpush1.bf16.msra.mxu0 %v1791
        %1813 = vmatprep.subr.bf16.mxu0 0
        %1814 = vmatpush1.bf16.msra.mxu0 %v1792
        %1815 = vmatprep.subr.bf16.mxu0 0
        %1816 = vmatpush1.bf16.msra.mxu0 %v1793
        %1817 = vmatprep.subr.bf16.mxu0 0
        %1818 = vmatpush1.bf16.msra.mxu0 %v1794
        %1819 = vmatprep.subr.bf16.mxu0 0
        %1820 = vmatpush1.bf16.msra.mxu0 0
        %1821 = vmatprep.subr.bf16.mxu0 0
        %1822 = vmatpush1.bf16.msra.mxu0 0
        %1823 = vmatprep.subr.bf16.mxu0 0
        %1824 = vmatpush1.bf16.msra.mxu0 0
        %1825 = vmatprep.subr.bf16.mxu0 0
        %1826 = vmatpush1.bf16.msra.mxu0 0
        %1827 = vmatprep.subr.bf16.mxu0 0
        %1828 = vmatpush1.bf16.msra.mxu0 0
        %1829 = vmatprep.subr.bf16.mxu0 0
        %1830 = vmatpush1.bf16.msra.mxu0 0
        %1831 = vmatprep.subr.bf16.mxu0 0
        %1832 = vmatpush1.bf16.msra.mxu0 0
        %1833 = vmatprep.subr.bf16.mxu0 0
        %1834 = vmatpush1.bf16.msra.mxu0 0
        %1835 = vmatprep.mubr.bf16.mxu0 0
        %1836 = vmatmul.mubr.bf16.gmra.mrb[0].mxu0 %v1731
        %v1837 = vpop.f32.mrb[0].mxu0
        %v1838 = vadd.f32 %v1753, %v1837
        %v1839 = vpop.f32.mrb[0].mxu0
        %v1840 = vpop.f32.mrb[0].mxu0
        %v1841 = vadd.f32 %v1753, %v1840
        %v1842 = vpop.f32.mrb[0].mxu0
        %1843 = vdwg.mxu0
        %v1844 = vadd.f32 %v1838, %v932
        %v1845 = vadd.f32 %v1841, %v933
        %v1846 = vld [vmem:[%s731] sm:$0x1]
        %v1847 = vld [vmem:[%s739] sm:$0x1]
        %1848 = vadd.xlane.f32.xlu0 %v1844
        %v1849 = vpop.xlane.xlu0 %1848
        %1850 = vadd.xlane.f32.xlu0 %v1845
        %v1851 = vpop.xlane.xlu0 %1850
        %v1852 = vrcp.pop 128.0
        %v1853 = vmul.f32 %v1849, %v1852
        %v1854 = vmul.f32 %v1851, %v1852
        %v1855 = vsub.f32 %v1844, %v1853
        %v1856 = vsub.f32 %v1845, %v1854
        %v1857 = vmul.f32 %v1855, %v1855
        %v1858 = vmul.f32 %v1856, %v1856
        %1859 = vadd.xlane.f32.xlu0 %v1857
        %v1860 = vpop.xlane.xlu0 %1859
        %1861 = vadd.xlane.f32.xlu0 %v1858
        %v1862 = vpop.xlane.xlu0 %1861
        %v1863 = vmul.f32 %v1860, %v1852
        %v1864 = vmul.f32 %v1862, %v1852
        %v1865 = vadd.f32 %v1863, 1e-12
        %v1866 = vadd.f32 %v1864, 1e-12
        %v1867 = vrsqrt.pop %v1865
        %v1868 = vrsqrt.pop %v1866
        %v1869 = vmul.f32 %v1855, %v1867
        %v1870 = vmul.f32 %v1856, %v1868
        %v1872 = vlaneseq
        %v1873 = vshrl.u32 %v1872, 7
        %v1874 = vsub.s32 0, %v1873
        %v1875 = vrot.slane %v1846, %v1874
        %v1877 = vmul.f32 %v1869, %v1875
        %v1878 = vmul.f32 %v1870, %v1875
        %v1880 = vlaneseq
        %v1881 = vshrl.u32 %v1880, 7
        %v1882 = vsub.s32 0, %v1881
        %v1883 = vrot.slane %v1847, %v1882
        %v1885 = vadd.f32 %v1877, %v1883
        %v1886 = vadd.f32 %v1878, %v1883
        %v1887 = vpack.c.bf16 %v1886, %v1885
        %v1888 = vld [vmem:[%s748] sm:$0xff]
        %v1889 = vld [vmem:[%s748 + $0x8] sm:$0xff]
        %v1890 = vld [vmem:[%s748 + $0x10] sm:$0xff]
        %v1891 = vld [vmem:[%s748 + $0x18] sm:$0xff]
        %v1892 = vld [vmem:[%s748 + $0x20] sm:$0xff]
        %v1893 = vld [vmem:[%s748 + $0x28] sm:$0xff]
        %v1894 = vld [vmem:[%s748 + $0x30] sm:$0xff]
        %v1895 = vld [vmem:[%s748 + $0x38] sm:$0xff]
        %v1896 = vld [vmem:[%s748 + $0x40] sm:$0xff]
        %v1897 = vld [vmem:[%s748 + $0x48] sm:$0xff]
        %v1898 = vld [vmem:[%s748 + $0x50] sm:$0xff]
        %v1899 = vld [vmem:[%s748 + $0x58] sm:$0xff]
        %v1900 = vld [vmem:[%s748 + $0x60] sm:$0xff]
        %v1901 = vld [vmem:[%s748 + $0x68] sm:$0xff]
        %v1902 = vld [vmem:[%s748 + $0x70] sm:$0xff]
        %v1903 = vld [vmem:[%s748 + $0x78] sm:$0xff]
        %v1904 = vld [vmem:[%s881] sm:$0x3]
        %v1906 = vlaneseq
        %v1907 = vshrl.u32 %v1906, 7
        %v1908 = vsub.s32 0, %v1907
        %v1909 = vrot.slane %v1904, %v1908
        %v1910 = vlaneseq
        %v1911 = vshrl.u32 %v1910, 7
        %v1912 = vsub.s32 1, %v1911
        %v1913 = vrot.slane %v1904, %v1912
        %v1932 = vunpack.c.l.b16 %v1888
        %v1933 = vunpack.c.h.b16 %v1888
        %v1934 = vunpack.c.l.b16 %v1889
        %v1935 = vunpack.c.h.b16 %v1889
        %v1936 = vunpack.c.l.b16 %v1890
        %v1937 = vunpack.c.h.b16 %v1890
        %v1938 = vunpack.c.l.b16 %v1891
        %v1939 = vunpack.c.h.b16 %v1891
        %v1940 = vunpack.c.l.b16 %v1892
        %v1941 = vunpack.c.h.b16 %v1892
        %v1942 = vunpack.c.l.b16 %v1893
        %v1943 = vunpack.c.h.b16 %v1893
        %v1944 = vunpack.c.l.b16 %v1894
        %v1945 = vunpack.c.h.b16 %v1894
        %v1946 = vunpack.c.l.b16 %v1895
        %v1947 = vunpack.c.h.b16 %v1895
        %v1948 = vunpack.c.l.b16 %v1896
        %v1949 = vunpack.c.h.b16 %v1896
        %v1950 = vunpack.c.l.b16 %v1897
        %v1951 = vunpack.c.h.b16 %v1897
        %v1952 = vunpack.c.l.b16 %v1898
        %v1953 = vunpack.c.h.b16 %v1898
        %v1954 = vunpack.c.l.b16 %v1899
        %v1955 = vunpack.c.h.b16 %v1899
        %v1956 = vunpack.c.l.b16 %v1900
        %v1957 = vunpack.c.h.b16 %v1900
        %v1958 = vunpack.c.l.b16 %v1901
        %v1959 = vunpack.c.h.b16 %v1901
        %v1960 = vunpack.c.l.b16 %v1902
        %v1961 = vunpack.c.h.b16 %v1902
        %v1962 = vunpack.c.l.b16 %v1903
        %v1963 = vunpack.c.h.b16 %v1903
        %v1964 = vpack.c.b16 %v1934, %v1932
        %v1965 = vpack.c.b16 %v1935, %v1933
        %v1966 = vpack.c.b16 %v1938, %v1936
        %v1967 = vpack.c.b16 %v1939, %v1937
        %v1968 = vpack.c.b16 %v1942, %v1940
        %v1969 = vpack.c.b16 %v1943, %v1941
        %v1970 = vpack.c.b16 %v1946, %v1944
        %v1971 = vpack.c.b16 %v1947, %v1945
        %v1972 = vpack.c.b16 %v1950, %v1948
        %v1973 = vpack.c.b16 %v1951, %v1949
        %v1974 = vpack.c.b16 %v1954, %v1952
        %v1975 = vpack.c.b16 %v1955, %v1953
        %v1976 = vpack.c.b16 %v1958, %v1956
        %v1977 = vpack.c.b16 %v1959, %v1957
        %v1978 = vpack.c.b16 %v1962, %v1960
        %v1979 = vpack.c.b16 %v1963, %v1961
        %1996 = vmatprep.subr.bf16.mxu0 %v1965
        %1997 = vmatpush1.bf16.msra.mxu0 %v1964
        %1998 = vmatprep.subr.bf16.mxu0 %v1967
        %1999 = vmatpush1.bf16.msra.mxu0 %v1966
        %2000 = vmatprep.subr.bf16.mxu0 %v1969
        %2001 = vmatpush1.bf16.msra.mxu0 %v1968
        %2002 = vmatprep.subr.bf16.mxu0 %v1971
        %2003 = vmatpush1.bf16.msra.mxu0 %v1970
        %2004 = vmatprep.subr.bf16.mxu0 %v1973
        %2005 = vmatpush1.bf16.msra.mxu0 %v1972
        %2006 = vmatprep.subr.bf16.mxu0 %v1975
        %2007 = vmatpush1.bf16.msra.mxu0 %v1974
        %2008 = vmatprep.subr.bf16.mxu0 %v1977
        %2009 = vmatpush1.bf16.msra.mxu0 %v1976
        %2010 = vmatprep.subr.bf16.mxu0 %v1979
        %2011 = vmatpush1.bf16.msra.mxu0 %v1978
        %2012 = vmatprep.subr.bf16.mxu0 0
        %2013 = vmatpush1.bf16.msra.mxu0 0
        %2014 = vmatprep.subr.bf16.mxu0 0
        %2015 = vmatpush1.bf16.msra.mxu0 0
        %2016 = vmatprep.subr.bf16.mxu0 0
        %2017 = vmatpush1.bf16.msra.mxu0 0
        %2018 = vmatprep.subr.bf16.mxu0 0
        %2019 = vmatpush1.bf16.msra.mxu0 0
        %2020 = vmatprep.subr.bf16.mxu0 0
        %2021 = vmatpush1.bf16.msra.mxu0 0
        %2022 = vmatprep.subr.bf16.mxu0 0
        %2023 = vmatpush1.bf16.msra.mxu0 0
        %2024 = vmatprep.subr.bf16.mxu0 0
        %2025 = vmatpush1.bf16.msra.mxu0 0
        %2026 = vmatprep.subr.bf16.mxu0 0
        %2027 = vmatpush1.bf16.msra.mxu0 0
        %2028 = vmatprep.mubr.bf16.mxu0 0
        %2029 = vmatmul.mubr.bf16.gmra.mrb[0].mxu0 %v1887
        %v2030 = vpop.f32.mrb[0].mxu0
        %v2031 = vadd.f32 %v1909, %v2030
        %v2032 = vpop.f32.mrb[0].mxu0
        %v2033 = vadd.f32 %v1913, %v2032
        %v2034 = vpop.f32.mrb[0].mxu0
        %v2035 = vadd.f32 %v1909, %v2034
        %v2036 = vpop.f32.mrb[0].mxu0
        %v2037 = vadd.f32 %v1913, %v2036
        %2038 = vdwg.mxu0
        %v2039 = vmul.f32 %v2031, 0.5
        %v2040 = vmul.f32 %v2033, 0.5
        %v2041 = vmul.f32 %v2035, 0.5
        %v2042 = vmul.f32 %v2037, 0.5
        %v2043 = vmul.f32 %v2031, 0.044715
        %v2044 = vmul.f32 %v2033, 0.044715
        %v2045 = vmul.f32 %v2035, 0.044715
        %v2046 = vmul.f32 %v2037, 0.044715
        %v2047 = vmul.f32 %v2043, %v2031
        %v2048 = vmul.f32 %v2044, %v2033
        %v2049 = vmul.f32 %v2045, %v2035
        %v2050 = vmul.f32 %v2046, %v2037
        %v2051 = vmul.f32 %v2047, %v2031
        %v2052 = vmul.f32 %v2048, %v2033
        %v2053 = vmul.f32 %v2049, %v2035
        %v2054 = vmul.f32 %v2050, %v2037
        %v2055 = vadd.f32 %v2031, %v2051
        %v2056 = vadd.f32 %v2033, %v2052
        %v2057 = vadd.f32 %v2035, %v2053
        %v2058 = vadd.f32 %v2037, %v2054
        %v2059 = vmul.f32 %v2055, 0.7978846
        %v2060 = vmul.f32 %v2056, 0.7978846
        %v2061 = vmul.f32 %v2057, 0.7978846
        %v2062 = vmul.f32 %v2058, 0.7978846
        %v2063 = vtanh.pop %v2059
        %v2064 = vtanh.pop %v2060
        %v2065 = vtanh.pop %v2061
        %v2066 = vtanh.pop %v2062
        %v2067 = vadd.f32 %v2063, 1.0
        %v2068 = vadd.f32 %v2064, 1.0
        %v2069 = vadd.f32 %v2065, 1.0
        %v2070 = vadd.f32 %v2066, 1.0
        %v2071 = vmul.f32 %v2039, %v2067
        %v2072 = vmul.f32 %v2040, %v2068
        %v2073 = vmul.f32 %v2041, %v2069
        %v2074 = vmul.f32 %v2042, %v2070
        %v2075 = vpack.c.bf16 %v2073, %v2071
        %v2076 = vpack.c.bf16 %v2074, %v2072
        %v2077 = vld [vmem:[%s757] sm:$0xf]
        %v2078 = vld [vmem:[%s757 + $0x4] sm:$0xf]
        %v2079 = vld [vmem:[%s757 + $0x8] sm:$0xf]
        %v2080 = vld [vmem:[%s757 + $0xc] sm:$0xf]
        %v2081 = vld [vmem:[%s757 + $0x10] sm:$0xf]
        %v2082 = vld [vmem:[%s757 + $0x14] sm:$0xf]
        %v2083 = vld [vmem:[%s757 + $0x18] sm:$0xf]
        %v2084 = vld [vmem:[%s757 + $0x1c] sm:$0xf]
        %v2085 = vld [vmem:[%s757 + $0x20] sm:$0xf]
        %v2086 = vld [vmem:[%s757 + $0x24] sm:$0xf]
        %v2087 = vld [vmem:[%s757 + $0x28] sm:$0xf]
        %v2088 = vld [vmem:[%s757 + $0x2c] sm:$0xf]
        %v2089 = vld [vmem:[%s757 + $0x30] sm:$0xf]
        %v2090 = vld [vmem:[%s757 + $0x34] sm:$0xf]
        %v2091 = vld [vmem:[%s757 + $0x38] sm:$0xf]
        %v2092 = vld [vmem:[%s757 + $0x3c] sm:$0xf]
        %v2093 = vld [vmem:[%s757 + $0x40] sm:$0xf]
        %v2094 = vld [vmem:[%s757 + $0x44] sm:$0xf]
        %v2095 = vld [vmem:[%s757 + $0x48] sm:$0xf]
        %v2096 = vld [vmem:[%s757 + $0x4c] sm:$0xf]
        %v2097 = vld [vmem:[%s757 + $0x50] sm:$0xf]
        %v2098 = vld [vmem:[%s757 + $0x54] sm:$0xf]
        %v2099 = vld [vmem:[%s757 + $0x58] sm:$0xf]
        %v2100 = vld [vmem:[%s757 + $0x5c] sm:$0xf]
        %v2101 = vld [vmem:[%s757 + $0x60] sm:$0xf]
        %v2102 = vld [vmem:[%s757 + $0x64] sm:$0xf]
        %v2103 = vld [vmem:[%s757 + $0x68] sm:$0xf]
        %v2104 = vld [vmem:[%s757 + $0x6c] sm:$0xf]
        %v2105 = vld [vmem:[%s757 + $0x70] sm:$0xf]
        %v2106 = vld [vmem:[%s757 + $0x74] sm:$0xf]
        %v2107 = vld [vmem:[%s757 + $0x78] sm:$0xf]
        %v2108 = vld [vmem:[%s757 + $0x7c] sm:$0xf]
        %v2109 = vld [vmem:[%s765] sm:$0x1]
        %v2111 = vlaneseq
        %v2112 = vshrl.u32 %v2111, 7
        %v2113 = vsub.s32 0, %v2112
        %v2114 = vrot.slane %v2109, %v2113
        %v2148 = vunpack.c.l.b16 %v2077
        %v2149 = vunpack.c.l.b16 %v2078
        %v2150 = vunpack.c.l.b16 %v2079
        %v2151 = vunpack.c.l.b16 %v2080
        %v2152 = vunpack.c.l.b16 %v2081
        %v2153 = vunpack.c.l.b16 %v2082
        %v2154 = vunpack.c.l.b16 %v2083
        %v2155 = vunpack.c.l.b16 %v2084
        %v2156 = vunpack.c.l.b16 %v2085
        %v2157 = vunpack.c.l.b16 %v2086
        %v2158 = vunpack.c.l.b16 %v2087
        %v2159 = vunpack.c.l.b16 %v2088
        %v2160 = vunpack.c.l.b16 %v2089
        %v2161 = vunpack.c.l.b16 %v2090
        %v2162 = vunpack.c.l.b16 %v2091
        %v2163 = vunpack.c.l.b16 %v2092
        %v2164 = vunpack.c.l.b16 %v2093
        %v2165 = vunpack.c.l.b16 %v2094
        %v2166 = vunpack.c.l.b16 %v2095
        %v2167 = vunpack.c.l.b16 %v2096
        %v2168 = vunpack.c.l.b16 %v2097
        %v2169 = vunpack.c.l.b16 %v2098
        %v2170 = vunpack.c.l.b16 %v2099
        %v2171 = vunpack.c.l.b16 %v2100
        %v2172 = vunpack.c.l.b16 %v2101
        %v2173 = vunpack.c.l.b16 %v2102
        %v2174 = vunpack.c.l.b16 %v2103
        %v2175 = vunpack.c.l.b16 %v2104
        %v2176 = vunpack.c.l.b16 %v2105
        %v2177 = vunpack.c.l.b16 %v2106
        %v2178 = vunpack.c.l.b16 %v2107
        %v2179 = vunpack.c.l.b16 %v2108
        %v2180 = vpack.c.b16 %v2149, %v2148
        %v2181 = vpack.c.b16 %v2151, %v2150
        %v2182 = vpack.c.b16 %v2153, %v2152
        %v2183 = vpack.c.b16 %v2155, %v2154
        %v2184 = vpack.c.b16 %v2157, %v2156
        %v2185 = vpack.c.b16 %v2159, %v2158
        %v2186 = vpack.c.b16 %v2161, %v2160
        %v2187 = vpack.c.b16 %v2163, %v2162
        %v2188 = vpack.c.b16 %v2165, %v2164
        %v2189 = vpack.c.b16 %v2167, %v2166
        %v2190 = vpack.c.b16 %v2169, %v2168
        %v2191 = vpack.c.b16 %v2171, %v2170
        %v2192 = vpack.c.b16 %v2173, %v2172
        %v2193 = vpack.c.b16 %v2175, %v2174
        %v2194 = vpack.c.b16 %v2177, %v2176
        %v2195 = vpack.c.b16 %v2179, %v2178
        %2212 = vmatprep.subr.bf16.mxu0 0
        %2213 = vmatpush1.bf16.msra.mxu0 %v2180
        %2214 = vmatprep.subr.bf16.mxu0 0
        %2215 = vmatpush1.bf16.msra.mxu0 %v2181
        %2216 = vmatprep.subr.bf16.mxu0 0
        %2217 = vmatpush1.bf16.msra.mxu0 %v2182
        %2218 = vmatprep.subr.bf16.mxu0 0
        %2219 = vmatpush1.bf16.msra.mxu0 %v2183
        %2220 = vmatprep.subr.bf16.mxu0 0
        %2221 = vmatpush1.bf16.msra.mxu0 %v2184
        %2222 = vmatprep.subr.bf16.mxu0 0
        %2223 = vmatpush1.bf16.msra.mxu0 %v2185
        %2224 = vmatprep.subr.bf16.mxu0 0
        %2225 = vmatpush1.bf16.msra.mxu0 %v2186
        %2226 = vmatprep.subr.bf16.mxu0 0
        %2227 = vmatpush1.bf16.msra.mxu0 %v2187
        %2228 = vmatprep.subr.bf16.mxu0 0
        %2229 = vmatpush1.bf16.msra.mxu0 %v2188
        %2230 = vmatprep.subr.bf16.mxu0 0
        %2231 = vmatpush1.bf16.msra.mxu0 %v2189
        %2232 = vmatprep.subr.bf16.mxu0 0
        %2233 = vmatpush1.bf16.msra.mxu0 %v2190
        %2234 = vmatprep.subr.bf16.mxu0 0
        %2235 = vmatpush1.bf16.msra.mxu0 %v2191
        %2236 = vmatprep.subr.bf16.mxu0 0
        %2237 = vmatpush1.bf16.msra.mxu0 %v2192
        %2238 = vmatprep.subr.bf16.mxu0 0
        %2239 = vmatpush1.bf16.msra.mxu0 %v2193
        %2240 = vmatprep.subr.bf16.mxu0 0
        %2241 = vmatpush1.bf16.msra.mxu0 %v2194
        %2242 = vmatprep.subr.bf16.mxu0 0
        %2243 = vmatpush1.bf16.msra.mxu0 %v2195
        %2244 = vmatprep.mubr.bf16.mxu0 %v2076
        %2245 = vmatmul.mubr.bf16.gmra.mrb[0].mxu0 %v2075
        %v2246 = vpop.f32.mrb[0].mxu0
        %v2247 = vadd.f32 %v2114, %v2246
        %v2248 = vpop.f32.mrb[0].mxu0
        %v2249 = vpop.f32.mrb[0].mxu0
        %v2250 = vadd.f32 %v2114, %v2249
        %v2251 = vpop.f32.mrb[0].mxu0
        %2252 = vdwg.mxu0
        %v2253 = vadd.f32 %v2247, %v1885
        %v2254 = vadd.f32 %v2250, %v1886
        %v2255 = vld [vmem:[%s773] sm:$0x1]
        %v2256 = vld [vmem:[%s781] sm:$0x1]
        %2257 = vadd.xlane.f32.xlu0 %v2253
        %v2258 = vpop.xlane.xlu0 %2257
        %2259 = vadd.xlane.f32.xlu0 %v2254
        %v2260 = vpop.xlane.xlu0 %2259
        %v2261 = vmul.f32 %v2258, %v1852
        %v2262 = vmul.f32 %v2260, %v1852
        %v2263 = vsub.f32 %v2253, %v2261
        %v2264 = vsub.f32 %v2254, %v2262
        %v2265 = vmul.f32 %v2263, %v2263
        %v2266 = vmul.f32 %v2264, %v2264
        %2267 = vadd.xlane.f32.xlu0 %v2265
        %v2268 = vpop.xlane.xlu0 %2267
        %2269 = vadd.xlane.f32.xlu0 %v2266
        %v2270 = vpop.xlane.xlu0 %2269
        %v2271 = vmul.f32 %v2268, %v1852
        %v2272 = vmul.f32 %v2270, %v1852
        %v2273 = vadd.f32 %v2271, 1e-12
        %v2274 = vadd.f32 %v2272, 1e-12
        %v2275 = vrsqrt.pop %v2273
        %v2276 = vrsqrt.pop %v2274
        %v2277 = vmul.f32 %v2263, %v2275
        %v2278 = vmul.f32 %v2264, %v2276
        %v2280 = vlaneseq
        %v2281 = vshrl.u32 %v2280, 7
        %v2282 = vsub.s32 0, %v2281
        %v2283 = vrot.slane %v2255, %v2282
        %v2285 = vmul.f32 %v2277, %v2283
        %v2286 = vmul.f32 %v2278, %v2283
        %v2288 = vlaneseq
        %v2289 = vshrl.u32 %v2288, 7
        %v2290 = vsub.s32 0, %v2289
        %v2291 = vrot.slane %v2256, %v2290
        %v2293 = vadd.f32 %v2285, %v2291
        %v2294 = vadd.f32 %v2286, %v2291
        %2295 = vst [vmem:[#allocation2] sm:$0xff] %v2293
        %2296 = vst [vmem:[#allocation2 + $0x8] sm:$0xff] %v2294
        %p2297 = scmp.eq.s32.totalorder %s29, 1
        // Predicated region
        $region137: #{dpr_context_encoder_forward.1} parent=83 // pred_check
          %p2298 = pneg %p2297
        $region138: #{dpr_context_encoder_forward.1} parent=83 // pred_check_branch
          %2300 = sbr.rel (%p2298) target = $region140
        $region139: #{dpr_context_encoder_forward.1} parent=83 // pred_region
          %2301 = vst [vmem:[%s16] sm:$0xff] %v2293
          %2302 = vst [vmem:[%s16 + $0x8] sm:$0xff] %v2294
        $region140: #{dpr_context_encoder_forward.1} parent=83 // pred_fallthru
          _
        // Predicated region
        $region141: #{dpr_context_encoder_forward.1} parent=83 // pred_check
          %p2303 = pneg %p438
        $region142: #{dpr_context_encoder_forward.1} parent=83 // pred_check_branch
          %2305 = sbr.rel (%p2303) target = $region144
        $region143: #{dpr_context_encoder_forward.1} parent=83 // pred_region
          _
        $region144: #{dpr_context_encoder_forward.1} parent=83 // pred_fallthru
          _
        // Predicated region
        $region145: #{dpr_context_encoder_forward.1} parent=83 // pred_check
          %p2306 = pneg %p438
        $region146: #{dpr_context_encoder_forward.1} parent=83 // pred_check_branch
          %2308 = sbr.rel (%p2306) target = $region148
        $region147: #{dpr_context_encoder_forward.1} parent=83 // pred_region
          _
        $region148: #{dpr_context_encoder_forward.1} parent=83 // pred_fallthru
          _
      $region84: #{dpr_context_encoder_forward.1} parent=5 // pred_fallthru
        _
      %p2309 = scmp.le.s32.totalorder 2, %s24
      // Predicated region
      $region149: #{dpr_context_encoder_forward.1} parent=5 // pred_check
        %p2310 = pneg %p2309
      $region150: #{dpr_context_encoder_forward.1} parent=5 // pred_check_branch
        %2312 = sbr.rel (%p2310) target = $region152
      $region151: #{dpr_context_encoder_forward.1} parent=5 // pred_region
        %s2313 = ssub.s32 %s24, 2
      $region152: #{dpr_context_encoder_forward.1} parent=5 // pred_fallthru
        _
    $region6: #{dpr_context_encoder_forward.1} parent=1 // loop_footer
      %s28 = sadd.s32 1, %s24
    $region7: #{dpr_context_encoder_forward.1} parent=1 // loop_footer_branch
      %23 = sbr.rel target = $region3
    $region8: #{dpr_context_encoder_forward.1} parent=1 // loop_exit
      _
    %2314 = vsyncpa [#allocation4], 1
    %s2315 = scalar_lea.sflag [#allocation4], 1
    %2316 = vsyncpa %s2315, 1
    %2317 = vsyncpa [#allocation6], 1

</llo_original>
